<compile_context>
chip_gen: v7x
topology: tpu7x:2x2x1
jax: 0.10.0
libtpu: 0.0.40
codegen_flags: <defaults>
</compile_context>

<pallas_src>
import numpy as np
import jax
import jax.numpy as jnp
from jax.experimental import pallas as pl
from jax.experimental.pallas import tpu as pltpu


# ----------------------------- Pallas kernel -------------------------------

def noisy_dueling_kernel(
    x_ref,                 # [TM, D]    f32 (cast to bf16 in-kernel)
    w1_ref, b1_ref,        # [D, H0]    bf16 / [1, H0]   f32   Linear
    w2_ref, b2_ref,        # [H0, H1]   bf16 / [1, H1]   f32   NoisyLinear
    wva1_ref, bva1_ref,    # [H1, H1]   bf16 / [1, H1]   f32   fused A||V hidden
    wva2_ref, bva2_ref,    # [H1, A+1]  bf16 / [1, A+1]  f32   block-diag A/V head
    q_ref,                 # [TM, A]    f32
):
    # In-kernel f32->bf16 cast: VPU op hidden under the MXU-bound first dot.
    # (If the producer already emits bf16 this astype is a no-op.)
    x = x_ref[...].astype(jnp.bfloat16)

    # feature layer: Linear -> ReLU -> NoisyLinear -> ReLU  (f32 accumulation)
    h0 = jnp.dot(x, w1_ref[...], preferred_element_type=jnp.float32) + b1_ref[...]
    h0 = jnp.maximum(h0, 0.0)
    feats = jnp.dot(h0.astype(jnp.bfloat16), w2_ref[...],
                    preferred_element_type=jnp.float32) + b2_ref[...]
    feats = jnp.maximum(feats, 0.0)

    # fused advantage||value hidden layer: one lane-dense [H1, H1] dot
    va_h = jnp.dot(feats.astype(jnp.bfloat16), wva1_ref[...],
                   preferred_element_type=jnp.float32) + bva1_ref[...]
    va_h = jnp.maximum(va_h, 0.0)

    # fused heads via block-diagonal weight: one [H1, A+1] dot.
    # Columns 0..A-1 are the advantages (lane-0-aligned wide slice, free);
    # column A is the value (only the 1-wide slice pays the lane offset).
    va = jnp.dot(va_h.astype(jnp.bfloat16), wva2_ref[...],
                 preferred_element_type=jnp.float32) + bva2_ref[...]

    A = q_ref.shape[-1]
    adv = va[:, :A]            # [TM, A]
    value = va[:, A:A + 1]     # [TM, 1]

    # dueling combine: q = V + (A - mean_a(A))
    adv_mean = jnp.mean(adv, axis=1, keepdims=True)
    q_ref[...] = value + (adv - adv_mean)


def _pick_tile(batch, max_tm=1024):
    """Batch-tile picker: amortize per-step overhead with big tiles while
    keeping >= 2 grid steps when B permits so both v7x TensorCores run."""
    if batch <= 256:
        return 128                      # <=1 tile for tiny B, 2 tiles at B=256
    tm = (batch // 2) // 128 * 128      # >= 2 grid steps
    return int(max(128, min(max_tm, tm)))


def noisy_dueling_mlp_forward(x_flat, packed, tm=None):
    """x_flat: [B, D] float32 (or bf16); packed: fused bf16 weights + f32 biases."""
    B, D = x_flat.shape
    H0 = packed["w1"].shape[1]
    H1 = packed["w2"].shape[1]
    A1 = packed["wva2"].shape[1]      # output_dim + 1
    A = A1 - 1

    if tm is None:
        tm = _pick_tile(B)
    n_tiles = pl.cdiv(B, tm)
    # No jnp.pad: Pallas masks the final partial block (row-wise MLP, so
    # garbage OOB input rows only feed OOB output rows, which are dropped).

    def const_spec(shape):
        # Weights/biases: same block for every grid step -> VMEM-resident.
        return pl.BlockSpec(shape, lambda i: (0, 0))

    in_specs = [
        pl.BlockSpec((tm, D), lambda i: (i, 0)),   # x tile
        const_spec((D, H0)),  const_spec((1, H0)),
        const_spec((H0, H1)), const_spec((1, H1)),
        const_spec((H1, H1)), const_spec((1, H1)),
        const_spec((H1, A1)), const_spec((1, A1)),
    ]
    out_spec = pl.BlockSpec((tm, A), lambda i: (i, 0))

    q = pl.pallas_call(
        noisy_dueling_kernel,
        out_shape=jax.ShapeDtypeStruct((B, A), jnp.float32),
        grid=(n_tiles,),
        in_specs=in_specs,
        out_specs=out_spec,
        compiler_params=pltpu.CompilerParams(
            dimension_semantics=("parallel",),
            vmem_limit_bytes=32 * 1024 * 1024),
    )(x_flat,
      packed["w1"], packed["b1"],
      packed["w2"], packed["b2"],
      packed["wva1"], packed["bva1"],
      packed["wva2"], packed["bva2"])
    return q


# --------------------- deterministic parameter setup -----------------------
# TODO(synk): NoisyLinear factored-Gaussian noise sampling (reset_noise) is
# done in plain JAX here; the kernel consumes the effective weights.
# TODO(synk): optional int8 (v6e) / fp8 (v7x) quantization of the dominant
# first-layer matmul is left out pending accuracy validation.

def _scale_noise(key, size):
    n = jax.random.normal(key, (size,), dtype=jnp.float32)
    return jnp.sign(n) * jnp.sqrt(jnp.abs(n))


def make_linear(key, in_f, out_f):
    """Plain nn.Linear-style deterministic init. Returns W [in,out], b [1,out]."""
    k_w, k_b = jax.random.split(key)
    bound = 1.0 / np.sqrt(in_f)
    w = jax.random.uniform(k_w, (out_f, in_f), minval=-bound, maxval=bound,
                           dtype=jnp.float32)
    b = jax.random.uniform(k_b, (out_f,), minval=-bound, maxval=bound,
                           dtype=jnp.float32)
    return w.T, b.reshape(1, out_f)


def make_noisy_linear(key, in_f, out_f, std_init=0.5):
    """NoisyLinear effective (training-mode) weights: mu + sigma * epsilon.
    Returns W [in,out], b [1,out]."""
    k_wmu, k_bmu, k_ein, k_eout = jax.random.split(key, 4)
    mu_range = 1.0 / np.sqrt(in_f)

    w_mu = jax.random.uniform(k_wmu, (out_f, in_f), minval=-mu_range,
                              maxval=mu_range, dtype=jnp.float32)
    w_sigma = jnp.full((out_f, in_f), std_init / np.sqrt(in_f), dtype=jnp.float32)
    b_mu = jax.random.uniform(k_bmu, (out_f,), minval=-mu_range,
                              maxval=mu_range, dtype=jnp.float32)
    b_sigma = jnp.full((out_f,), std_init / np.sqrt(out_f), dtype=jnp.float32)

    eps_in = _scale_noise(k_ein, in_f)
    eps_out = _scale_noise(k_eout, out_f)
    w_eps = jnp.outer(eps_out, eps_in)
    b_eps = eps_out

    w = w_mu + w_sigma * w_eps
    b = b_mu + b_sigma * b_eps
    return w.T, b.reshape(1, out_f)


def build_params(key, input_dim, output_dim, hidden_dims=(128, 128), std_init=0.5):
    h0, h1 = hidden_dims
    assert h1 % 2 == 0, "hidden_dims[1] must be even for the V/A split"
    half = h1 // 2
    keys = jax.random.split(key, 6)
    p = {}
    p["w1"], p["b1"] = make_linear(keys[0], input_dim, h0)
    p["w2"], p["b2"] = make_noisy_linear(keys[1], h0, h1, std_init)
    p["wv1"], p["bv1"] = make_noisy_linear(keys[2], h1, half, std_init)
    p["wv2"], p["bv2"] = make_noisy_linear(keys[3], half, 1, std_init)
    p["wa1"], p["ba1"] = make_noisy_linear(keys[4], h1, half, std_init)
    p["wa2"], p["ba2"] = make_noisy_linear(keys[5], half, output_dim, std_init)
    return p


def pack_params(p):
    """Fuse the value/advantage streams and cast weights to bf16.

    Advantage stream comes FIRST so the wide advantage slice in the kernel
    starts at lane 0 (tile-aligned, no cross-lane relayout):
      wva1 = [wa1 || wv1]              : [H1, H1]
      wva2 = [[wa2, 0 ],                : [H1, A+1]  (cols 0..A-1 = advantages,
              [0,  wv2]]                              col A = value)
    Biases are concatenated the same way and stay f32.
    """
    half = p["wa1"].shape[1]
    A = p["wa2"].shape[1]

    wva1 = jnp.concatenate([p["wa1"], p["wv1"]], axis=1)           # [H1, 2*half]
    bva1 = jnp.concatenate([p["ba1"], p["bv1"]], axis=1)           # [1, 2*half]

    top = jnp.concatenate([p["wa2"], jnp.zeros((half, 1), jnp.float32)], axis=1)
    bot = jnp.concatenate([jnp.zeros((half, A), jnp.float32), p["wv2"]], axis=1)
    wva2 = jnp.concatenate([top, bot], axis=0)                     # [2*half, A+1]
    bva2 = jnp.concatenate([p["ba2"], p["bv2"]], axis=1)           # [1, A+1]

    return {
        "w1": p["w1"].astype(jnp.bfloat16), "b1": p["b1"],
        "w2": p["w2"].astype(jnp.bfloat16), "b2": p["b2"],
        "wva1": wva1.astype(jnp.bfloat16), "bva1": bva1,
        "wva2": wva2.astype(jnp.bfloat16), "bva2": bva2,
    }


# ------------------------------ reference ----------------------------------

def reference_forward(x_flat, p):
    """Full-precision (f32) reference of the original module semantics."""
    relu = lambda t: jnp.maximum(t, 0.0)
    h = relu(x_flat @ p["w1"] + p["b1"])
    f = relu(h @ p["w2"] + p["b2"])
    v = relu(f @ p["wv1"] + p["bv1"]) @ p["wv2"] + p["bv2"]
    a = relu(f @ p["wa1"] + p["ba1"]) @ p["wa2"] + p["ba2"]
    return v + (a - jnp.mean(a, axis=1, keepdims=True))


# --------------------------------- main -------------------------------------

if __name__ == "__main__":
    key = jax.random.PRNGKey(0)
    k_x, k_p = jax.random.split(key)

    # input_dim = (4, 16, 16) -> flattened 1024, output_dim = 6 actions
    B, C, H, W = 2, 4, 16, 16
    output_dim = 6
    hidden_dims = (128, 128)

    x = jax.random.normal(k_x, (B, C, H, W), dtype=jnp.float32)
    x_flat = x.reshape(B, -1)  # same as torch x.view(x.size(0), -1)

    params = build_params(k_p, C * H * W, output_dim, hidden_dims, std_init=0.5)
    packed = pack_params(params)

    # B=2 with TM=128 exercises the partial-final-block (no-pad) path.
    q = noisy_dueling_mlp_forward(x_flat, packed)
    q = jax.block_until_ready(q)

    q_ref = reference_forward(x_flat, params)
    assert q.shape == (B, output_dim)
    # bf16 weights/activations (f32 accumulation) vs f32 reference -> loose tol.
    assert jnp.allclose(q, q_ref, atol=5e-2, rtol=5e-2), (
        f"max abs diff {jnp.max(jnp.abs(q - q_ref))}")

    print("KERNEL_OK")
</pallas_src>

<mosaic_0001>
module attributes {stable_mosaic.version = 11 : i64} {
  func.func @noisy_dueling_kernel(%arg0: i32, %arg1: memref<128x1024xf32, #tpu.memory_space<vmem>>, %arg2: memref<1024x128xbf16, #tpu.memory_space<vmem>>, %arg3: memref<1x128xf32, #tpu.memory_space<vmem>>, %arg4: memref<128x128xbf16, #tpu.memory_space<vmem>>, %arg5: memref<1x128xf32, #tpu.memory_space<vmem>>, %arg6: memref<128x128xbf16, #tpu.memory_space<vmem>>, %arg7: memref<1x128xf32, #tpu.memory_space<vmem>>, %arg8: memref<128x7xbf16, #tpu.memory_space<vmem>>, %arg9: memref<1x7xf32, #tpu.memory_space<vmem>>, %arg10: memref<128x6xf32, #tpu.memory_space<vmem>>) attributes {dimension_semantics = [#tpu.dimension_semantics<parallel>], iteration_bounds = array<i64: 1>, scalar_prefetch = 0 : i64, scratch_operands = 0 : i64, tpu.core_type = #tpu.core_type<tc>, window_params = [{transform_indices = @transform_0, window_bounds = array<i64: 128, 1024>}, {pipeline_mode = #tpu.pipeline_mode<synchronous>, transform_indices = @transform_1, window_bounds = array<i64: 1024, 128>}, {pipeline_mode = #tpu.pipeline_mode<synchronous>, transform_indices = @transform_2, window_bounds = array<i64: 1, 128>}, {pipeline_mode = #tpu.pipeline_mode<synchronous>, transform_indices = @transform_3, window_bounds = array<i64: 128, 128>}, {pipeline_mode = #tpu.pipeline_mode<synchronous>, transform_indices = @transform_4, window_bounds = array<i64: 1, 128>}, {pipeline_mode = #tpu.pipeline_mode<synchronous>, transform_indices = @transform_5, window_bounds = array<i64: 128, 128>}, {pipeline_mode = #tpu.pipeline_mode<synchronous>, transform_indices = @transform_6, window_bounds = array<i64: 1, 128>}, {pipeline_mode = #tpu.pipeline_mode<synchronous>, transform_indices = @transform_7, window_bounds = array<i64: 128, 7>}, {pipeline_mode = #tpu.pipeline_mode<synchronous>, transform_indices = @transform_8, window_bounds = array<i64: 1, 7>}, {transform_indices = @transform_9, window_bounds = array<i64: 128, 6>}]} {
    %c0 = arith.constant 0 : index
    %c0_0 = arith.constant 0 : index
    %0 = vector.load %arg1[%c0, %c0_0] : memref<128x1024xf32, #tpu.memory_space<vmem>>, vector<128x1024xf32>
    %1 = arith.truncf %0 : vector<128x1024xf32> to vector<128x1024xbf16>
    %c0_1 = arith.constant 0 : index
    %c0_2 = arith.constant 0 : index
    %2 = vector.load %arg2[%c0_1, %c0_2] : memref<1024x128xbf16, #tpu.memory_space<vmem>>, vector<1024x128xbf16>
    %cst = arith.constant dense<0.000000e+00> : vector<128x128xf32>
    %3 = tpu.matmul %1, %2, %cst {dimension_numbers = #tpu.dot_dimension_numbers<[1], [0], [0], [1], [0, 0, 1, 1], [], []>} : vector<128x1024xbf16>, vector<1024x128xbf16>, vector<128x128xf32> -> vector<128x128xf32>
    %c0_3 = arith.constant 0 : index
    %c0_4 = arith.constant 0 : index
    %4 = vector.load %arg3[%c0_3, %c0_4] : memref<1x128xf32, #tpu.memory_space<vmem>>, vector<1x128xf32>
    %5 = vector.broadcast %4 : vector<1x128xf32> to vector<128x128xf32>
    %6 = arith.addf %3, %5 : vector<128x128xf32>
    %cst_5 = arith.constant 0.000000e+00 : f32
    %7 = vector.broadcast %cst_5 : f32 to vector<128x128xf32>
    %8 = arith.maximumf %6, %7 : vector<128x128xf32>
    %9 = arith.truncf %8 : vector<128x128xf32> to vector<128x128xbf16>
    %c0_6 = arith.constant 0 : index
    %c0_7 = arith.constant 0 : index
    %10 = vector.load %arg4[%c0_6, %c0_7] : memref<128x128xbf16, #tpu.memory_space<vmem>>, vector<128x128xbf16>
    %cst_8 = arith.constant dense<0.000000e+00> : vector<128x128xf32>
    %11 = tpu.matmul %9, %10, %cst_8 {dimension_numbers = #tpu.dot_dimension_numbers<[1], [0], [0], [1], [0, 0, 1, 1], [], []>} : vector<128x128xbf16>, vector<128x128xbf16>, vector<128x128xf32> -> vector<128x128xf32>
    %c0_9 = arith.constant 0 : index
    %c0_10 = arith.constant 0 : index
    %12 = vector.load %arg5[%c0_9, %c0_10] : memref<1x128xf32, #tpu.memory_space<vmem>>, vector<1x128xf32>
    %13 = vector.broadcast %12 : vector<1x128xf32> to vector<128x128xf32>
    %14 = arith.addf %11, %13 : vector<128x128xf32>
    %cst_11 = arith.constant 0.000000e+00 : f32
    %15 = vector.broadcast %cst_11 : f32 to vector<128x128xf32>
    %16 = arith.maximumf %14, %15 : vector<128x128xf32>
    %17 = arith.truncf %16 : vector<128x128xf32> to vector<128x128xbf16>
    %c0_12 = arith.constant 0 : index
    %c0_13 = arith.constant 0 : index
    %18 = vector.load %arg6[%c0_12, %c0_13] : memref<128x128xbf16, #tpu.memory_space<vmem>>, vector<128x128xbf16>
    %cst_14 = arith.constant dense<0.000000e+00> : vector<128x128xf32>
    %19 = tpu.matmul %17, %18, %cst_14 {dimension_numbers = #tpu.dot_dimension_numbers<[1], [0], [0], [1], [0, 0, 1, 1], [], []>} : vector<128x128xbf16>, vector<128x128xbf16>, vector<128x128xf32> -> vector<128x128xf32>
    %c0_15 = arith.constant 0 : index
    %c0_16 = arith.constant 0 : index
    %20 = vector.load %arg7[%c0_15, %c0_16] : memref<1x128xf32, #tpu.memory_space<vmem>>, vector<1x128xf32>
    %21 = vector.broadcast %20 : vector<1x128xf32> to vector<128x128xf32>
    %22 = arith.addf %19, %21 : vector<128x128xf32>
    %cst_17 = arith.constant 0.000000e+00 : f32
    %23 = vector.broadcast %cst_17 : f32 to vector<128x128xf32>
    %24 = arith.maximumf %22, %23 : vector<128x128xf32>
    %25 = arith.truncf %24 : vector<128x128xf32> to vector<128x128xbf16>
    %c0_18 = arith.constant 0 : index
    %c0_19 = arith.constant 0 : index
    %26 = vector.load %arg8[%c0_18, %c0_19] : memref<128x7xbf16, #tpu.memory_space<vmem>>, vector<128x7xbf16>
    %cst_20 = arith.constant dense<0.000000e+00> : vector<128x7xf32>
    %27 = tpu.matmul %25, %26, %cst_20 {dimension_numbers = #tpu.dot_dimension_numbers<[1], [0], [0], [1], [0, 0, 1, 1], [], []>} : vector<128x128xbf16>, vector<128x7xbf16>, vector<128x7xf32> -> vector<128x7xf32>
    %c0_21 = arith.constant 0 : index
    %c0_22 = arith.constant 0 : index
    %28 = vector.load %arg9[%c0_21, %c0_22] : memref<1x7xf32, #tpu.memory_space<vmem>>, vector<1x7xf32>
    %29 = vector.broadcast %28 : vector<1x7xf32> to vector<128x7xf32>
    %30 = arith.addf %27, %29 : vector<128x7xf32>
    %31 = vector.extract_strided_slice %30 {offsets = [0, 0], sizes = [128, 6], strides = [1, 1]} : vector<128x7xf32> to vector<128x6xf32>
    %32 = vector.extract_strided_slice %30 {offsets = [0, 6], sizes = [128, 1], strides = [1, 1]} : vector<128x7xf32> to vector<128x1xf32>
    %cst_23 = arith.constant dense<0.000000e+00> : vector<128xf32>
    %33 = vector.multi_reduction <add>, %31, %cst_23 [1] : vector<128x6xf32> to vector<128xf32>
    %34 = vector.shape_cast %33 : vector<128xf32> to vector<128x1xf32>
    %cst_24 = arith.constant 6.000000e+00 : f32
    %35 = vector.broadcast %cst_24 : f32 to vector<128x1xf32>
    %36 = arith.divf %34, %35 : vector<128x1xf32>
    %37 = vector.broadcast %36 : vector<128x1xf32> to vector<128x6xf32>
    %38 = arith.subf %31, %37 : vector<128x6xf32>
    %39 = vector.broadcast %32 : vector<128x1xf32> to vector<128x6xf32>
    %40 = arith.addf %39, %38 : vector<128x6xf32>
    %c0_25 = arith.constant 0 : index
    %c0_26 = arith.constant 0 : index
    %41 = vector.load %arg10[%c0_25, %c0_26] : memref<128x6xf32, #tpu.memory_space<vmem>>, vector<128x6xf32>
    tpu.vector_store %arg10[%c0_25, %c0_26], %40 {strides = array<i32>} : memref<128x6xf32, #tpu.memory_space<vmem>>, vector<128x6xf32>,
    return
  }
  func.func @transform_0(%arg0: i32) -> (i32, i32) {
    %c0_i32 = arith.constant 0 : i32
    %c0_i32_0 = arith.constant 0 : i32
    return %arg0, %c0_i32 : i32, i32
  }
  func.func @transform_1(%arg0: i32) -> (i32, i32) {
    %c0_i32 = arith.constant 0 : i32
    %c0_i32_0 = arith.constant 0 : i32
    %c0_i32_1 = arith.constant 0 : i32
    return %c0_i32, %c0_i32_0 : i32, i32
  }
  func.func @transform_2(%arg0: i32) -> (i32, i32) {
    %c0_i32 = arith.constant 0 : i32
    %c0_i32_0 = arith.constant 0 : i32
    %c0_i32_1 = arith.constant 0 : i32
    return %c0_i32, %c0_i32_0 : i32, i32
  }
  func.func @transform_3(%arg0: i32) -> (i32, i32) {
    %c0_i32 = arith.constant 0 : i32
    %c0_i32_0 = arith.constant 0 : i32
    %c0_i32_1 = arith.constant 0 : i32
    return %c0_i32, %c0_i32_0 : i32, i32
  }
  func.func @transform_4(%arg0: i32) -> (i32, i32) {
    %c0_i32 = arith.constant 0 : i32
    %c0_i32_0 = arith.constant 0 : i32
    %c0_i32_1 = arith.constant 0 : i32
    return %c0_i32, %c0_i32_0 : i32, i32
  }
  func.func @transform_5(%arg0: i32) -> (i32, i32) {
    %c0_i32 = arith.constant 0 : i32
    %c0_i32_0 = arith.constant 0 : i32
    %c0_i32_1 = arith.constant 0 : i32
    return %c0_i32, %c0_i32_0 : i32, i32
  }
  func.func @transform_6(%arg0: i32) -> (i32, i32) {
    %c0_i32 = arith.constant 0 : i32
    %c0_i32_0 = arith.constant 0 : i32
    %c0_i32_1 = arith.constant 0 : i32
    return %c0_i32, %c0_i32_0 : i32, i32
  }
  func.func @transform_7(%arg0: i32) -> (i32, i32) {
    %c0_i32 = arith.constant 0 : i32
    %c0_i32_0 = arith.constant 0 : i32
    %c0_i32_1 = arith.constant 0 : i32
    return %c0_i32, %c0_i32_0 : i32, i32
  }
  func.func @transform_8(%arg0: i32) -> (i32, i32) {
    %c0_i32 = arith.constant 0 : i32
    %c0_i32_0 = arith.constant 0 : i32
    %c0_i32_1 = arith.constant 0 : i32
    return %c0_i32, %c0_i32_0 : i32, i32
  }
  func.func @transform_9(%arg0: i32) -> (i32, i32) {
    %c0_i32 = arith.constant 0 : i32
    %c0_i32_0 = arith.constant 0 : i32
    return %arg0, %c0_i32 : i32, i32
  }
}

</mosaic_0001>

<llo_original>
// kernel: tpu_custom_call.1
$region0: #{tpu_custom_call.1}
  #allocation0 [shape = 'u32[]', space=smem, size = 0x4, offset = 0x4, fixed_abs, tag = 'smem constant byte address 0x4 - core index']
  #allocation1 [shape = 'u32[144,128]{1,0:T(1,128)}', space=vmem, size = 0x12000, scoped, tag = 'internal scratch']
  %s0 = inlined_call_operand.hbm [shape: f32[2,1024], index: 0, kind: input, shape index: {}]
  %s1 = inlined_call_operand.hbm [shape: bf16[1024,128], index: 1, kind: input, shape index: {}]
  %s2 = inlined_call_operand.vmem [shape: f32[1,128], index: 2, kind: input, shape index: {}]
  %s3 = inlined_call_operand.vmem [shape: bf16[128,128], index: 3, kind: input, shape index: {}]
  %s4 = inlined_call_operand.vmem [shape: f32[1,128], index: 4, kind: input, shape index: {}]
  %s5 = inlined_call_operand.hbm [shape: bf16[128,128], index: 5, kind: input, shape index: {}]
  %s6 = inlined_call_operand.vmem [shape: f32[1,128], index: 6, kind: input, shape index: {}]
  %s7 = inlined_call_operand.vmem [shape: bf16[128,7], index: 7, kind: input, shape index: {}]
  %s8 = inlined_call_operand.vmem [shape: f32[1,7], index: 8, kind: input, shape index: {}]
  %s9 = inlined_call_operand.hbm [shape: f32[2,6], index: 9, kind: output, shape index: {}]
  %s10 = sld [smem:[#allocation0]]
  $region58: #{tpu_custom_call.1} parent=0
    _
  %s12 = ssub.s32 1, %s10
  %s13 = scalar_select 0, %s12, %s10
  $region1: #{tpu_custom_call.1} parent=0
    #allocation2 [shape = 'u8[524288]{0}', space=vmem, size = 0x80000, scoped, tag = 'input window, operand 0, single buffered']
    #allocation3 [shape = 's32[1]{0}', space=sflag, size = 0x4, scoped, tag = 'scoped memory for tpu_custom_call.1']
    #allocation4 [shape = 's32[1]{0}', space=sflag, size = 0x4, scoped, tag = 'scoped memory for tpu_custom_call.1']
    #allocation5 [shape = 'u8[262144]{0}', space=vmem, size = 0x40000, scoped, tag = 'input window, operand 1, single buffered']
    #allocation6 [shape = 's32[1]{0}', space=sflag, size = 0x4, scoped, tag = 'scoped memory for tpu_custom_call.1']
    #allocation7 [shape = 'u8[32768]{0}', space=vmem, size = 0x8000, scoped, tag = 'input window, operand 5, single buffered']
    #allocation8 [shape = 'u8[65536]{0}', space=vmem, size = 0x10000, scoped, tag = 'output window, operand 0, single buffered']
    %14 = vsyncpa [#allocation3], 0
    %15 = vsyncpa [#allocation6], 0
    %16 = vsyncpa [#allocation4], 0
    // Predicated region
    $region2: #{tpu_custom_call.1} parent=1 // pred_check
      _
    $region3: #{tpu_custom_call.1} parent=1 // pred_check_branch
      %18 = sbr.rel (0) target = $region5
    $region4: #{tpu_custom_call.1} parent=1 // pred_region
      %s20 = ssub.s32 16384, 256
      %21 = vsyncadd [#allocation3], %s20
      %s22 = sshll.u32 [#allocation2], 4
      %s23 = int_to_ptr.vmem [resolvable:$true] %s22
      %28 = dma.hbm_to_vmem [thread:$0]  %s0, 256, %s23, [#allocation3], 256, 256, 16
    $region5: #{tpu_custom_call.1} parent=1 // pred_fallthru
      _
    // Predicated region
    $region6: #{tpu_custom_call.1} parent=1 // pred_check
      _
    $region7: #{tpu_custom_call.1} parent=1 // pred_check_branch
      %30 = sbr.rel (0) target = $region9
    $region8: #{tpu_custom_call.1} parent=1 // pred_region
      %s32 = ssub.s32 8192, 8192
      %33 = vsyncadd [#allocation6], %s32
      %s34 = sshll.u32 [#allocation5], 4
      %s35 = int_to_ptr.vmem [resolvable:$true] %s34
      %40 = dma.hbm_to_vmem [thread:$0]  %s1, 8192, %s35, [#allocation6], 64, 64, 4
    $region9: #{tpu_custom_call.1} parent=1 // pred_fallthru
      _
    // Predicated region
    $region10: #{tpu_custom_call.1} parent=1 // pred_check
      _
    $region11: #{tpu_custom_call.1} parent=1 // pred_check_branch
      %42 = sbr.rel (0) target = $region13
    $region12: #{tpu_custom_call.1} parent=1 // pred_region
      _
    $region13: #{tpu_custom_call.1} parent=1 // pred_fallthru
      _
    // Predicated region
    $region14: #{tpu_custom_call.1} parent=1 // pred_check
      _
    $region15: #{tpu_custom_call.1} parent=1 // pred_check_branch
      %44 = sbr.rel (0) target = $region17
    $region16: #{tpu_custom_call.1} parent=1 // pred_region
      _
    $region17: #{tpu_custom_call.1} parent=1 // pred_fallthru
      _
    // Predicated region
    $region18: #{tpu_custom_call.1} parent=1 // pred_check
      _
    $region19: #{tpu_custom_call.1} parent=1 // pred_check_branch
      %46 = sbr.rel (0) target = $region21
    $region20: #{tpu_custom_call.1} parent=1 // pred_region
      _
    $region21: #{tpu_custom_call.1} parent=1 // pred_fallthru
      _
    // Predicated region
    $region22: #{tpu_custom_call.1} parent=1 // pred_check
      _
    $region23: #{tpu_custom_call.1} parent=1 // pred_check_branch
      %48 = sbr.rel (0) target = $region25
    $region24: #{tpu_custom_call.1} parent=1 // pred_region
      %s50 = ssub.s32 1024, 1024
      %51 = vsyncadd [#allocation6], %s50
      %s52 = sshll.u32 [#allocation7], 4
      %s53 = int_to_ptr.vmem [resolvable:$true] %s52
      %58 = dma.hbm_to_vmem [thread:$0]  %s5, 1024, %s53, [#allocation6], 64, 64, 4
    $region25: #{tpu_custom_call.1} parent=1 // pred_fallthru
      _
    // Predicated region
    $region26: #{tpu_custom_call.1} parent=1 // pred_check
      _
    $region27: #{tpu_custom_call.1} parent=1 // pred_check_branch
      %60 = sbr.rel (0) target = $region29
    $region28: #{tpu_custom_call.1} parent=1 // pred_region
      _
    $region29: #{tpu_custom_call.1} parent=1 // pred_fallthru
      _
    // Predicated region
    $region30: #{tpu_custom_call.1} parent=1 // pred_check
      _
    $region31: #{tpu_custom_call.1} parent=1 // pred_check_branch
      %62 = sbr.rel (0) target = $region33
    $region32: #{tpu_custom_call.1} parent=1 // pred_region
      _
    $region33: #{tpu_custom_call.1} parent=1 // pred_fallthru
      _
    // Predicated region
    $region34: #{tpu_custom_call.1} parent=1 // pred_check
      _
    $region35: #{tpu_custom_call.1} parent=1 // pred_check_branch
      %64 = sbr.rel (0) target = $region37
    $region36: #{tpu_custom_call.1} parent=1 // pred_region
      _
    $region37: #{tpu_custom_call.1} parent=1 // pred_fallthru
      _
    // Predicated region
    $region38: #{tpu_custom_call.1} parent=1 // pred_check
      _
    $region39: #{tpu_custom_call.1} parent=1 // pred_check_branch
      %66 = sbr.rel (0) target = $region41
    $region40: #{tpu_custom_call.1} parent=1 // pred_region
      %67 = dma.done [#allocation3], 16384
    $region41: #{tpu_custom_call.1} parent=1 // pred_fallthru
      _
    // Predicated region
    $region42: #{tpu_custom_call.1} parent=1 // pred_check
      _
    $region43: #{tpu_custom_call.1} parent=1 // pred_check_branch
      %69 = sbr.rel (0) target = $region45
    $region44: #{tpu_custom_call.1} parent=1 // pred_region
      %70 = dma.done [#allocation6], 8192
    $region45: #{tpu_custom_call.1} parent=1 // pred_fallthru
      _
    // Predicated region
    $region46: #{tpu_custom_call.1} parent=1 // pred_check
      _
    $region47: #{tpu_custom_call.1} parent=1 // pred_check_branch
      %72 = sbr.rel (0) target = $region49
    $region48: #{tpu_custom_call.1} parent=1 // pred_region
      %73 = dma.done [#allocation6], 1024
    $region49: #{tpu_custom_call.1} parent=1 // pred_fallthru
      _
    %v75 = vld [vmem:[#allocation2] sm:$0xff]
    %v76 = vld [vmem:[#allocation2 + $0x8] sm:$0xff]
    %v77 = vld [vmem:[#allocation2 + $0x10] sm:$0xff]
    %v78 = vld [vmem:[#allocation2 + $0x18] sm:$0xff]
    %v79 = vld [vmem:[#allocation2 + $0x20] sm:$0xff]
    %v80 = vld [vmem:[#allocation2 + $0x28] sm:$0xff]
    %v81 = vld [vmem:[#allocation2 + $0x30] sm:$0xff]
    %v82 = vld [vmem:[#allocation2 + $0x38] sm:$0xff]
    %v83 = vld [vmem:[#allocation2 + $0x40] sm:$0xff]
    %v84 = vld [vmem:[#allocation2 + $0x48] sm:$0xff]
    %v85 = vld [vmem:[#allocation2 + $0x50] sm:$0xff]
    %v86 = vld [vmem:[#allocation2 + $0x58] sm:$0xff]
    %v87 = vld [vmem:[#allocation2 + $0x60] sm:$0xff]
    %v88 = vld [vmem:[#allocation2 + $0x68] sm:$0xff]
    %v89 = vld [vmem:[#allocation2 + $0x70] sm:$0xff]
    %v90 = vld [vmem:[#allocation2 + $0x78] sm:$0xff]
    %v91 = vld [vmem:[#allocation2 + $0x80] sm:$0xff]
    %v92 = vld [vmem:[#allocation2 + $0x88] sm:$0xff]
    %v93 = vld [vmem:[#allocation2 + $0x90] sm:$0xff]
    %v94 = vld [vmem:[#allocation2 + $0x98] sm:$0xff]
    %v95 = vld [vmem:[#allocation2 + $0xa0] sm:$0xff]
    %v96 = vld [vmem:[#allocation2 + $0xa8] sm:$0xff]
    %v97 = vld [vmem:[#allocation2 + $0xb0] sm:$0xff]
    %v98 = vld [vmem:[#allocation2 + $0xb8] sm:$0xff]
    %v99 = vld [vmem:[#allocation2 + $0xc0] sm:$0xff]
    %v100 = vld [vmem:[#allocation2 + $0xc8] sm:$0xff]
    %v101 = vld [vmem:[#allocation2 + $0xd0] sm:$0xff]
    %v102 = vld [vmem:[#allocation2 + $0xd8] sm:$0xff]
    %v103 = vld [vmem:[#allocation2 + $0xe0] sm:$0xff]
    %v104 = vld [vmem:[#allocation2 + $0xe8] sm:$0xff]
    %v105 = vld [vmem:[#allocation2 + $0xf0] sm:$0xff]
    %v106 = vld [vmem:[#allocation2 + $0xf8] sm:$0xff]
    %v107 = vld [vmem:[#allocation2 + $0x100] sm:$0xff]
    %v108 = vld [vmem:[#allocation2 + $0x108] sm:$0xff]
    %v109 = vld [vmem:[#allocation2 + $0x110] sm:$0xff]
    %v110 = vld [vmem:[#allocation2 + $0x118] sm:$0xff]
    %v111 = vld [vmem:[#allocation2 + $0x120] sm:$0xff]
    %v112 = vld [vmem:[#allocation2 + $0x128] sm:$0xff]
    %v113 = vld [vmem:[#allocation2 + $0x130] sm:$0xff]
    %v114 = vld [vmem:[#allocation2 + $0x138] sm:$0xff]
    %v115 = vld [vmem:[#allocation2 + $0x140] sm:$0xff]
    %v116 = vld [vmem:[#allocation2 + $0x148] sm:$0xff]
    %v117 = vld [vmem:[#allocation2 + $0x150] sm:$0xff]
    %v118 = vld [vmem:[#allocation2 + $0x158] sm:$0xff]
    %v119 = vld [vmem:[#allocation2 + $0x160] sm:$0xff]
    %v120 = vld [vmem:[#allocation2 + $0x168] sm:$0xff]
    %v121 = vld [vmem:[#allocation2 + $0x170] sm:$0xff]
    %v122 = vld [vmem:[#allocation2 + $0x178] sm:$0xff]
    %v123 = vld [vmem:[#allocation2 + $0x180] sm:$0xff]
    %v124 = vld [vmem:[#allocation2 + $0x188] sm:$0xff]
    %v125 = vld [vmem:[#allocation2 + $0x190] sm:$0xff]
    %v126 = vld [vmem:[#allocation2 + $0x198] sm:$0xff]
    %v127 = vld [vmem:[#allocation2 + $0x1a0] sm:$0xff]
    %v128 = vld [vmem:[#allocation2 + $0x1a8] sm:$0xff]
    %v129 = vld [vmem:[#allocation2 + $0x1b0] sm:$0xff]
    %v130 = vld [vmem:[#allocation2 + $0x1b8] sm:$0xff]
    %v131 = vld [vmem:[#allocation2 + $0x1c0] sm:$0xff]
    %v132 = vld [vmem:[#allocation2 + $0x1c8] sm:$0xff]
    %v133 = vld [vmem:[#allocation2 + $0x1d0] sm:$0xff]
    %v134 = vld [vmem:[#allocation2 + $0x1d8] sm:$0xff]
    %v135 = vld [vmem:[#allocation2 + $0x1e0] sm:$0xff]
    %v136 = vld [vmem:[#allocation2 + $0x1e8] sm:$0xff]
    %v137 = vld [vmem:[#allocation2 + $0x1f0] sm:$0xff]
    %v138 = vld [vmem:[#allocation2 + $0x1f8] sm:$0xff]
    %v139 = vld [vmem:[#allocation2 + $0x200] sm:$0xff]
    %v140 = vld [vmem:[#allocation2 + $0x208] sm:$0xff]
    %v141 = vld [vmem:[#allocation2 + $0x210] sm:$0xff]
    %v142 = vld [vmem:[#allocation2 + $0x218] sm:$0xff]
    %v143 = vld [vmem:[#allocation2 + $0x220] sm:$0xff]
    %v144 = vld [vmem:[#allocation2 + $0x228] sm:$0xff]
    %v145 = vld [vmem:[#allocation2 + $0x230] sm:$0xff]
    %v146 = vld [vmem:[#allocation2 + $0x238] sm:$0xff]
    %v147 = vld [vmem:[#allocation2 + $0x240] sm:$0xff]
    %v148 = vld [vmem:[#allocation2 + $0x248] sm:$0xff]
    %v149 = vld [vmem:[#allocation2 + $0x250] sm:$0xff]
    %v150 = vld [vmem:[#allocation2 + $0x258] sm:$0xff]
    %v151 = vld [vmem:[#allocation2 + $0x260] sm:$0xff]
    %v152 = vld [vmem:[#allocation2 + $0x268] sm:$0xff]
    %v153 = vld [vmem:[#allocation2 + $0x270] sm:$0xff]
    %v154 = vld [vmem:[#allocation2 + $0x278] sm:$0xff]
    %v155 = vld [vmem:[#allocation2 + $0x280] sm:$0xff]
    %v156 = vld [vmem:[#allocation2 + $0x288] sm:$0xff]
    %v157 = vld [vmem:[#allocation2 + $0x290] sm:$0xff]
    %v158 = vld [vmem:[#allocation2 + $0x298] sm:$0xff]
    %v159 = vld [vmem:[#allocation2 + $0x2a0] sm:$0xff]
    %v160 = vld [vmem:[#allocation2 + $0x2a8] sm:$0xff]
    %v161 = vld [vmem:[#allocation2 + $0x2b0] sm:$0xff]
    %v162 = vld [vmem:[#allocation2 + $0x2b8] sm:$0xff]
    %v163 = vld [vmem:[#allocation2 + $0x2c0] sm:$0xff]
    %v164 = vld [vmem:[#allocation2 + $0x2c8] sm:$0xff]
    %v165 = vld [vmem:[#allocation2 + $0x2d0] sm:$0xff]
    %v166 = vld [vmem:[#allocation2 + $0x2d8] sm:$0xff]
    %v167 = vld [vmem:[#allocation2 + $0x2e0] sm:$0xff]
    %v168 = vld [vmem:[#allocation2 + $0x2e8] sm:$0xff]
    %v169 = vld [vmem:[#allocation2 + $0x2f0] sm:$0xff]
    %v170 = vld [vmem:[#allocation2 + $0x2f8] sm:$0xff]
    %v171 = vld [vmem:[#allocation2 + $0x300] sm:$0xff]
    %v172 = vld [vmem:[#allocation2 + $0x308] sm:$0xff]
    %v173 = vld [vmem:[#allocation2 + $0x310] sm:$0xff]
    %v174 = vld [vmem:[#allocation2 + $0x318] sm:$0xff]
    %v175 = vld [vmem:[#allocation2 + $0x320] sm:$0xff]
    %v176 = vld [vmem:[#allocation2 + $0x328] sm:$0xff]
    %v177 = vld [vmem:[#allocation2 + $0x330] sm:$0xff]
    %v178 = vld [vmem:[#allocation2 + $0x338] sm:$0xff]
    %v179 = vld [vmem:[#allocation2 + $0x340] sm:$0xff]
    %v180 = vld [vmem:[#allocation2 + $0x348] sm:$0xff]
    %v181 = vld [vmem:[#allocation2 + $0x350] sm:$0xff]
    %v182 = vld [vmem:[#allocation2 + $0x358] sm:$0xff]
    %v183 = vld [vmem:[#allocation2 + $0x360] sm:$0xff]
    %v184 = vld [vmem:[#allocation2 + $0x368] sm:$0xff]
    %v185 = vld [vmem:[#allocation2 + $0x370] sm:$0xff]
    %v186 = vld [vmem:[#allocation2 + $0x378] sm:$0xff]
    %v187 = vld [vmem:[#allocation2 + $0x380] sm:$0xff]
    %v188 = vld [vmem:[#allocation2 + $0x388] sm:$0xff]
    %v189 = vld [vmem:[#allocation2 + $0x390] sm:$0xff]
    %v190 = vld [vmem:[#allocation2 + $0x398] sm:$0xff]
    %v191 = vld [vmem:[#allocation2 + $0x3a0] sm:$0xff]
    %v192 = vld [vmem:[#allocation2 + $0x3a8] sm:$0xff]
    %v193 = vld [vmem:[#allocation2 + $0x3b0] sm:$0xff]
    %v194 = vld [vmem:[#allocation2 + $0x3b8] sm:$0xff]
    %v195 = vld [vmem:[#allocation2 + $0x3c0] sm:$0xff]
    %v196 = vld [vmem:[#allocation2 + $0x3c8] sm:$0xff]
    %v197 = vld [vmem:[#allocation2 + $0x3d0] sm:$0xff]
    %v198 = vld [vmem:[#allocation2 + $0x3d8] sm:$0xff]
    %v199 = vld [vmem:[#allocation2 + $0x3e0] sm:$0xff]
    %v200 = vld [vmem:[#allocation2 + $0x3e8] sm:$0xff]
    %v201 = vld [vmem:[#allocation2 + $0x3f0] sm:$0xff]
    %v202 = vld [vmem:[#allocation2 + $0x3f8] sm:$0xff]
    %v331 = vcombine.low %v75, %v77
    %v332 = vcombine.high %v75, %v77
    %v333 = vcombine.low %v79, %v81
    %v334 = vcombine.high %v79, %v81
    %v336 = vunpack.c.l.s4 1983009808
    %v337 = vunpack.c.0.s8 %v336
    %v338 = vlaneseq
    %v339 = vshrl.u32 %v338, 7
    %v340 = vsub.s32 %v337, %v339
    %v341 = vrot.slane %v331, %v340
    %v343 = vunpack.c.l.s4 1983009808
    %v344 = vunpack.c.0.s8 %v343
    %v345 = vlaneseq
    %v346 = vshrl.u32 %v345, 7
    %v347 = vsub.s32 %v344, %v346
    %v348 = vrot.slane %v332, %v347
    %v350 = vunpack.c.l.s4 1983009808
    %v351 = vunpack.c.0.s8 %v350
    %v352 = vlaneseq
    %v353 = vshrl.u32 %v352, 7
    %v354 = vsub.s32 %v351, %v353
    %v355 = vrot.slane %v333, %v354
    %v357 = vunpack.c.l.s4 1983009808
    %v358 = vunpack.c.0.s8 %v357
    %v359 = vlaneseq
    %v360 = vshrl.u32 %v359, 7
    %v361 = vsub.s32 %v358, %v360
    %v362 = vrot.slane %v334, %v361
    %v363 = vcombine.low %v341, %v355
    %v364 = vcombine.high %v341, %v355
    %v365 = vcombine.low %v348, %v362
    %v366 = vcombine.high %v348, %v362
    %v367 = vcombine.low %v76, %v78
    %v368 = vcombine.high %v76, %v78
    %v369 = vcombine.low %v80, %v82
    %v370 = vcombine.high %v80, %v82
    %v372 = vunpack.c.l.s4 1983009808
    %v373 = vunpack.c.0.s8 %v372
    %v374 = vlaneseq
    %v375 = vshrl.u32 %v374, 7
    %v376 = vsub.s32 %v373, %v375
    %v377 = vrot.slane %v367, %v376
    %v379 = vunpack.c.l.s4 1983009808
    %v380 = vunpack.c.0.s8 %v379
    %v381 = vlaneseq
    %v382 = vshrl.u32 %v381, 7
    %v383 = vsub.s32 %v380, %v382
    %v384 = vrot.slane %v368, %v383
    %v386 = vunpack.c.l.s4 1983009808
    %v387 = vunpack.c.0.s8 %v386
    %v388 = vlaneseq
    %v389 = vshrl.u32 %v388, 7
    %v390 = vsub.s32 %v387, %v389
    %v391 = vrot.slane %v369, %v390
    %v393 = vunpack.c.l.s4 1983009808
    %v394 = vunpack.c.0.s8 %v393
    %v395 = vlaneseq
    %v396 = vshrl.u32 %v395, 7
    %v397 = vsub.s32 %v394, %v396
    %v398 = vrot.slane %v370, %v397
    %v399 = vcombine.low %v377, %v391
    %v400 = vcombine.high %v377, %v391
    %v401 = vcombine.low %v384, %v398
    %v402 = vcombine.high %v384, %v398
    %v403 = vcombine.low %v83, %v85
    %v404 = vcombine.high %v83, %v85
    %v405 = vcombine.low %v87, %v89
    %v406 = vcombine.high %v87, %v89
    %v408 = vunpack.c.l.s4 1983009808
    %v409 = vunpack.c.0.s8 %v408
    %v410 = vlaneseq
    %v411 = vshrl.u32 %v410, 7
    %v412 = vsub.s32 %v409, %v411
    %v413 = vrot.slane %v403, %v412
    %v415 = vunpack.c.l.s4 1983009808
    %v416 = vunpack.c.0.s8 %v415
    %v417 = vlaneseq
    %v418 = vshrl.u32 %v417, 7
    %v419 = vsub.s32 %v416, %v418
    %v420 = vrot.slane %v404, %v419
    %v422 = vunpack.c.l.s4 1983009808
    %v423 = vunpack.c.0.s8 %v422
    %v424 = vlaneseq
    %v425 = vshrl.u32 %v424, 7
    %v426 = vsub.s32 %v423, %v425
    %v427 = vrot.slane %v405, %v426
    %v429 = vunpack.c.l.s4 1983009808
    %v430 = vunpack.c.0.s8 %v429
    %v431 = vlaneseq
    %v432 = vshrl.u32 %v431, 7
    %v433 = vsub.s32 %v430, %v432
    %v434 = vrot.slane %v406, %v433
    %v435 = vcombine.low %v413, %v427
    %v436 = vcombine.high %v413, %v427
    %v437 = vcombine.low %v420, %v434
    %v438 = vcombine.high %v420, %v434
    %v439 = vcombine.low %v84, %v86
    %v440 = vcombine.high %v84, %v86
    %v441 = vcombine.low %v88, %v90
    %v442 = vcombine.high %v88, %v90
    %v444 = vunpack.c.l.s4 1983009808
    %v445 = vunpack.c.0.s8 %v444
    %v446 = vlaneseq
    %v447 = vshrl.u32 %v446, 7
    %v448 = vsub.s32 %v445, %v447
    %v449 = vrot.slane %v439, %v448
    %v451 = vunpack.c.l.s4 1983009808
    %v452 = vunpack.c.0.s8 %v451
    %v453 = vlaneseq
    %v454 = vshrl.u32 %v453, 7
    %v455 = vsub.s32 %v452, %v454
    %v456 = vrot.slane %v440, %v455
    %v458 = vunpack.c.l.s4 1983009808
    %v459 = vunpack.c.0.s8 %v458
    %v460 = vlaneseq
    %v461 = vshrl.u32 %v460, 7
    %v462 = vsub.s32 %v459, %v461
    %v463 = vrot.slane %v441, %v462
    %v465 = vunpack.c.l.s4 1983009808
    %v466 = vunpack.c.0.s8 %v465
    %v467 = vlaneseq
    %v468 = vshrl.u32 %v467, 7
    %v469 = vsub.s32 %v466, %v468
    %v470 = vrot.slane %v442, %v469
    %v471 = vcombine.low %v449, %v463
    %v472 = vcombine.high %v449, %v463
    %v473 = vcombine.low %v456, %v470
    %v474 = vcombine.high %v456, %v470
    %v475 = vcombine.low %v91, %v93
    %v476 = vcombine.high %v91, %v93
    %v477 = vcombine.low %v95, %v97
    %v478 = vcombine.high %v95, %v97
    %v480 = vunpack.c.l.s4 1983009808
    %v481 = vunpack.c.0.s8 %v480
    %v482 = vlaneseq
    %v483 = vshrl.u32 %v482, 7
    %v484 = vsub.s32 %v481, %v483
    %v485 = vrot.slane %v475, %v484
    %v487 = vunpack.c.l.s4 1983009808
    %v488 = vunpack.c.0.s8 %v487
    %v489 = vlaneseq
    %v490 = vshrl.u32 %v489, 7
    %v491 = vsub.s32 %v488, %v490
    %v492 = vrot.slane %v476, %v491
    %v494 = vunpack.c.l.s4 1983009808
    %v495 = vunpack.c.0.s8 %v494
    %v496 = vlaneseq
    %v497 = vshrl.u32 %v496, 7
    %v498 = vsub.s32 %v495, %v497
    %v499 = vrot.slane %v477, %v498
    %v501 = vunpack.c.l.s4 1983009808
    %v502 = vunpack.c.0.s8 %v501
    %v503 = vlaneseq
    %v504 = vshrl.u32 %v503, 7
    %v505 = vsub.s32 %v502, %v504
    %v506 = vrot.slane %v478, %v505
    %v507 = vcombine.low %v485, %v499
    %v508 = vcombine.high %v485, %v499
    %v509 = vcombine.low %v492, %v506
    %v510 = vcombine.high %v492, %v506
    %v511 = vcombine.low %v92, %v94
    %v512 = vcombine.high %v92, %v94
    %v513 = vcombine.low %v96, %v98
    %v514 = vcombine.high %v96, %v98
    %v516 = vunpack.c.l.s4 1983009808
    %v517 = vunpack.c.0.s8 %v516
    %v518 = vlaneseq
    %v519 = vshrl.u32 %v518, 7
    %v520 = vsub.s32 %v517, %v519
    %v521 = vrot.slane %v511, %v520
    %v523 = vunpack.c.l.s4 1983009808
    %v524 = vunpack.c.0.s8 %v523
    %v525 = vlaneseq
    %v526 = vshrl.u32 %v525, 7
    %v527 = vsub.s32 %v524, %v526
    %v528 = vrot.slane %v512, %v527
    %v530 = vunpack.c.l.s4 1983009808
    %v531 = vunpack.c.0.s8 %v530
    %v532 = vlaneseq
    %v533 = vshrl.u32 %v532, 7
    %v534 = vsub.s32 %v531, %v533
    %v535 = vrot.slane %v513, %v534
    %v537 = vunpack.c.l.s4 1983009808
    %v538 = vunpack.c.0.s8 %v537
    %v539 = vlaneseq
    %v540 = vshrl.u32 %v539, 7
    %v541 = vsub.s32 %v538, %v540
    %v542 = vrot.slane %v514, %v541
    %v543 = vcombine.low %v521, %v535
    %v544 = vcombine.high %v521, %v535
    %v545 = vcombine.low %v528, %v542
    %v546 = vcombine.high %v528, %v542
    %v547 = vcombine.low %v99, %v101
    %v548 = vcombine.high %v99, %v101
    %v549 = vcombine.low %v103, %v105
    %v550 = vcombine.high %v103, %v105
    %v552 = vunpack.c.l.s4 1983009808
    %v553 = vunpack.c.0.s8 %v552
    %v554 = vlaneseq
    %v555 = vshrl.u32 %v554, 7
    %v556 = vsub.s32 %v553, %v555
    %v557 = vrot.slane %v547, %v556
    %v559 = vunpack.c.l.s4 1983009808
    %v560 = vunpack.c.0.s8 %v559
    %v561 = vlaneseq
    %v562 = vshrl.u32 %v561, 7
    %v563 = vsub.s32 %v560, %v562
    %v564 = vrot.slane %v548, %v563
    %v566 = vunpack.c.l.s4 1983009808
    %v567 = vunpack.c.0.s8 %v566
    %v568 = vlaneseq
    %v569 = vshrl.u32 %v568, 7
    %v570 = vsub.s32 %v567, %v569
    %v571 = vrot.slane %v549, %v570
    %v573 = vunpack.c.l.s4 1983009808
    %v574 = vunpack.c.0.s8 %v573
    %v575 = vlaneseq
    %v576 = vshrl.u32 %v575, 7
    %v577 = vsub.s32 %v574, %v576
    %v578 = vrot.slane %v550, %v577
    %v579 = vcombine.low %v557, %v571
    %v580 = vcombine.high %v557, %v571
    %v581 = vcombine.low %v564, %v578
    %v582 = vcombine.high %v564, %v578
    %v583 = vcombine.low %v100, %v102
    %v584 = vcombine.high %v100, %v102
    %v585 = vcombine.low %v104, %v106
    %v586 = vcombine.high %v104, %v106
    %v588 = vunpack.c.l.s4 1983009808
    %v589 = vunpack.c.0.s8 %v588
    %v590 = vlaneseq
    %v591 = vshrl.u32 %v590, 7
    %v592 = vsub.s32 %v589, %v591
    %v593 = vrot.slane %v583, %v592
    %v595 = vunpack.c.l.s4 1983009808
    %v596 = vunpack.c.0.s8 %v595
    %v597 = vlaneseq
    %v598 = vshrl.u32 %v597, 7
    %v599 = vsub.s32 %v596, %v598
    %v600 = vrot.slane %v584, %v599
    %v602 = vunpack.c.l.s4 1983009808
    %v603 = vunpack.c.0.s8 %v602
    %v604 = vlaneseq
    %v605 = vshrl.u32 %v604, 7
    %v606 = vsub.s32 %v603, %v605
    %v607 = vrot.slane %v585, %v606
    %v609 = vunpack.c.l.s4 1983009808
    %v610 = vunpack.c.0.s8 %v609
    %v611 = vlaneseq
    %v612 = vshrl.u32 %v611, 7
    %v613 = vsub.s32 %v610, %v612
    %v614 = vrot.slane %v586, %v613
    %v615 = vcombine.low %v593, %v607
    %v616 = vcombine.high %v593, %v607
    %v617 = vcombine.low %v600, %v614
    %v618 = vcombine.high %v600, %v614
    %v619 = vcombine.low %v107, %v109
    %v620 = vcombine.high %v107, %v109
    %v621 = vcombine.low %v111, %v113
    %v622 = vcombine.high %v111, %v113
    %v624 = vunpack.c.l.s4 1983009808
    %v625 = vunpack.c.0.s8 %v624
    %v626 = vlaneseq
    %v627 = vshrl.u32 %v626, 7
    %v628 = vsub.s32 %v625, %v627
    %v629 = vrot.slane %v619, %v628
    %v631 = vunpack.c.l.s4 1983009808
    %v632 = vunpack.c.0.s8 %v631
    %v633 = vlaneseq
    %v634 = vshrl.u32 %v633, 7
    %v635 = vsub.s32 %v632, %v634
    %v636 = vrot.slane %v620, %v635
    %v638 = vunpack.c.l.s4 1983009808
    %v639 = vunpack.c.0.s8 %v638
    %v640 = vlaneseq
    %v641 = vshrl.u32 %v640, 7
    %v642 = vsub.s32 %v639, %v641
    %v643 = vrot.slane %v621, %v642
    %v645 = vunpack.c.l.s4 1983009808
    %v646 = vunpack.c.0.s8 %v645
    %v647 = vlaneseq
    %v648 = vshrl.u32 %v647, 7
    %v649 = vsub.s32 %v646, %v648
    %v650 = vrot.slane %v622, %v649
    %v651 = vcombine.low %v629, %v643
    %v652 = vcombine.high %v629, %v643
    %v653 = vcombine.low %v636, %v650
    %v654 = vcombine.high %v636, %v650
    %v655 = vcombine.low %v108, %v110
    %v656 = vcombine.high %v108, %v110
    %v657 = vcombine.low %v112, %v114
    %v658 = vcombine.high %v112, %v114
    %v660 = vunpack.c.l.s4 1983009808
    %v661 = vunpack.c.0.s8 %v660
    %v662 = vlaneseq
    %v663 = vshrl.u32 %v662, 7
    %v664 = vsub.s32 %v661, %v663
    %v665 = vrot.slane %v655, %v664
    %v667 = vunpack.c.l.s4 1983009808
    %v668 = vunpack.c.0.s8 %v667
    %v669 = vlaneseq
    %v670 = vshrl.u32 %v669, 7
    %v671 = vsub.s32 %v668, %v670
    %v672 = vrot.slane %v656, %v671
    %v674 = vunpack.c.l.s4 1983009808
    %v675 = vunpack.c.0.s8 %v674
    %v676 = vlaneseq
    %v677 = vshrl.u32 %v676, 7
    %v678 = vsub.s32 %v675, %v677
    %v679 = vrot.slane %v657, %v678
    %v681 = vunpack.c.l.s4 1983009808
    %v682 = vunpack.c.0.s8 %v681
    %v683 = vlaneseq
    %v684 = vshrl.u32 %v683, 7
    %v685 = vsub.s32 %v682, %v684
    %v686 = vrot.slane %v658, %v685
    %v687 = vcombine.low %v665, %v679
    %v688 = vcombine.high %v665, %v679
    %v689 = vcombine.low %v672, %v686
    %v690 = vcombine.high %v672, %v686
    %v691 = vcombine.low %v115, %v117
    %v692 = vcombine.high %v115, %v117
    %v693 = vcombine.low %v119, %v121
    %v694 = vcombine.high %v119, %v121
    %v696 = vunpack.c.l.s4 1983009808
    %v697 = vunpack.c.0.s8 %v696
    %v698 = vlaneseq
    %v699 = vshrl.u32 %v698, 7
    %v700 = vsub.s32 %v697, %v699
    %v701 = vrot.slane %v691, %v700
    %v703 = vunpack.c.l.s4 1983009808
    %v704 = vunpack.c.0.s8 %v703
    %v705 = vlaneseq
    %v706 = vshrl.u32 %v705, 7
    %v707 = vsub.s32 %v704, %v706
    %v708 = vrot.slane %v692, %v707
    %v710 = vunpack.c.l.s4 1983009808
    %v711 = vunpack.c.0.s8 %v710
    %v712 = vlaneseq
    %v713 = vshrl.u32 %v712, 7
    %v714 = vsub.s32 %v711, %v713
    %v715 = vrot.slane %v693, %v714
    %v717 = vunpack.c.l.s4 1983009808
    %v718 = vunpack.c.0.s8 %v717
    %v719 = vlaneseq
    %v720 = vshrl.u32 %v719, 7
    %v721 = vsub.s32 %v718, %v720
    %v722 = vrot.slane %v694, %v721
    %v723 = vcombine.low %v701, %v715
    %v724 = vcombine.high %v701, %v715
    %v725 = vcombine.low %v708, %v722
    %v726 = vcombine.high %v708, %v722
    %v727 = vcombine.low %v116, %v118
    %v728 = vcombine.high %v116, %v118
    %v729 = vcombine.low %v120, %v122
    %v730 = vcombine.high %v120, %v122
    %v732 = vunpack.c.l.s4 1983009808
    %v733 = vunpack.c.0.s8 %v732
    %v734 = vlaneseq
    %v735 = vshrl.u32 %v734, 7
    %v736 = vsub.s32 %v733, %v735
    %v737 = vrot.slane %v727, %v736
    %v739 = vunpack.c.l.s4 1983009808
    %v740 = vunpack.c.0.s8 %v739
    %v741 = vlaneseq
    %v742 = vshrl.u32 %v741, 7
    %v743 = vsub.s32 %v740, %v742
    %v744 = vrot.slane %v728, %v743
    %v746 = vunpack.c.l.s4 1983009808
    %v747 = vunpack.c.0.s8 %v746
    %v748 = vlaneseq
    %v749 = vshrl.u32 %v748, 7
    %v750 = vsub.s32 %v747, %v749
    %v751 = vrot.slane %v729, %v750
    %v753 = vunpack.c.l.s4 1983009808
    %v754 = vunpack.c.0.s8 %v753
    %v755 = vlaneseq
    %v756 = vshrl.u32 %v755, 7
    %v757 = vsub.s32 %v754, %v756
    %v758 = vrot.slane %v730, %v757
    %v759 = vcombine.low %v737, %v751
    %v760 = vcombine.high %v737, %v751
    %v761 = vcombine.low %v744, %v758
    %v762 = vcombine.high %v744, %v758
    %v763 = vcombine.low %v123, %v125
    %v764 = vcombine.high %v123, %v125
    %v765 = vcombine.low %v127, %v129
    %v766 = vcombine.high %v127, %v129
    %v768 = vunpack.c.l.s4 1983009808
    %v769 = vunpack.c.0.s8 %v768
    %v770 = vlaneseq
    %v771 = vshrl.u32 %v770, 7
    %v772 = vsub.s32 %v769, %v771
    %v773 = vrot.slane %v763, %v772
    %v775 = vunpack.c.l.s4 1983009808
    %v776 = vunpack.c.0.s8 %v775
    %v777 = vlaneseq
    %v778 = vshrl.u32 %v777, 7
    %v779 = vsub.s32 %v776, %v778
    %v780 = vrot.slane %v764, %v779
    %v782 = vunpack.c.l.s4 1983009808
    %v783 = vunpack.c.0.s8 %v782
    %v784 = vlaneseq
    %v785 = vshrl.u32 %v784, 7
    %v786 = vsub.s32 %v783, %v785
    %v787 = vrot.slane %v765, %v786
    %v789 = vunpack.c.l.s4 1983009808
    %v790 = vunpack.c.0.s8 %v789
    %v791 = vlaneseq
    %v792 = vshrl.u32 %v791, 7
    %v793 = vsub.s32 %v790, %v792
    %v794 = vrot.slane %v766, %v793
    %v795 = vcombine.low %v773, %v787
    %v796 = vcombine.high %v773, %v787
    %v797 = vcombine.low %v780, %v794
    %v798 = vcombine.high %v780, %v794
    %v799 = vcombine.low %v124, %v126
    %v800 = vcombine.high %v124, %v126
    %v801 = vcombine.low %v128, %v130
    %v802 = vcombine.high %v128, %v130
    %v804 = vunpack.c.l.s4 1983009808
    %v805 = vunpack.c.0.s8 %v804
    %v806 = vlaneseq
    %v807 = vshrl.u32 %v806, 7
    %v808 = vsub.s32 %v805, %v807
    %v809 = vrot.slane %v799, %v808
    %v811 = vunpack.c.l.s4 1983009808
    %v812 = vunpack.c.0.s8 %v811
    %v813 = vlaneseq
    %v814 = vshrl.u32 %v813, 7
    %v815 = vsub.s32 %v812, %v814
    %v816 = vrot.slane %v800, %v815
    %v818 = vunpack.c.l.s4 1983009808
    %v819 = vunpack.c.0.s8 %v818
    %v820 = vlaneseq
    %v821 = vshrl.u32 %v820, 7
    %v822 = vsub.s32 %v819, %v821
    %v823 = vrot.slane %v801, %v822
    %v825 = vunpack.c.l.s4 1983009808
    %v826 = vunpack.c.0.s8 %v825
    %v827 = vlaneseq
    %v828 = vshrl.u32 %v827, 7
    %v829 = vsub.s32 %v826, %v828
    %v830 = vrot.slane %v802, %v829
    %v831 = vcombine.low %v809, %v823
    %v832 = vcombine.high %v809, %v823
    %v833 = vcombine.low %v816, %v830
    %v834 = vcombine.high %v816, %v830
    %v835 = vcombine.low %v131, %v133
    %v836 = vcombine.high %v131, %v133
    %v837 = vcombine.low %v135, %v137
    %v838 = vcombine.high %v135, %v137
    %v840 = vunpack.c.l.s4 1983009808
    %v841 = vunpack.c.0.s8 %v840
    %v842 = vlaneseq
    %v843 = vshrl.u32 %v842, 7
    %v844 = vsub.s32 %v841, %v843
    %v845 = vrot.slane %v835, %v844
    %v847 = vunpack.c.l.s4 1983009808
    %v848 = vunpack.c.0.s8 %v847
    %v849 = vlaneseq
    %v850 = vshrl.u32 %v849, 7
    %v851 = vsub.s32 %v848, %v850
    %v852 = vrot.slane %v836, %v851
    %v854 = vunpack.c.l.s4 1983009808
    %v855 = vunpack.c.0.s8 %v854
    %v856 = vlaneseq
    %v857 = vshrl.u32 %v856, 7
    %v858 = vsub.s32 %v855, %v857
    %v859 = vrot.slane %v837, %v858
    %v861 = vunpack.c.l.s4 1983009808
    %v862 = vunpack.c.0.s8 %v861
    %v863 = vlaneseq
    %v864 = vshrl.u32 %v863, 7
    %v865 = vsub.s32 %v862, %v864
    %v866 = vrot.slane %v838, %v865
    %v867 = vcombine.low %v845, %v859
    %v868 = vcombine.high %v845, %v859
    %v869 = vcombine.low %v852, %v866
    %v870 = vcombine.high %v852, %v866
    %v871 = vcombine.low %v132, %v134
    %v872 = vcombine.high %v132, %v134
    %v873 = vcombine.low %v136, %v138
    %v874 = vcombine.high %v136, %v138
    %v876 = vunpack.c.l.s4 1983009808
    %v877 = vunpack.c.0.s8 %v876
    %v878 = vlaneseq
    %v879 = vshrl.u32 %v878, 7
    %v880 = vsub.s32 %v877, %v879
    %v881 = vrot.slane %v871, %v880
    %v883 = vunpack.c.l.s4 1983009808
    %v884 = vunpack.c.0.s8 %v883
    %v885 = vlaneseq
    %v886 = vshrl.u32 %v885, 7
    %v887 = vsub.s32 %v884, %v886
    %v888 = vrot.slane %v872, %v887
    %v890 = vunpack.c.l.s4 1983009808
    %v891 = vunpack.c.0.s8 %v890
    %v892 = vlaneseq
    %v893 = vshrl.u32 %v892, 7
    %v894 = vsub.s32 %v891, %v893
    %v895 = vrot.slane %v873, %v894
    %v897 = vunpack.c.l.s4 1983009808
    %v898 = vunpack.c.0.s8 %v897
    %v899 = vlaneseq
    %v900 = vshrl.u32 %v899, 7
    %v901 = vsub.s32 %v898, %v900
    %v902 = vrot.slane %v874, %v901
    %v903 = vcombine.low %v881, %v895
    %v904 = vcombine.high %v881, %v895
    %v905 = vcombine.low %v888, %v902
    %v906 = vcombine.high %v888, %v902
    %v907 = vcombine.low %v139, %v141
    %v908 = vcombine.high %v139, %v141
    %v909 = vcombine.low %v143, %v145
    %v910 = vcombine.high %v143, %v145
    %v912 = vunpack.c.l.s4 1983009808
    %v913 = vunpack.c.0.s8 %v912
    %v914 = vlaneseq
    %v915 = vshrl.u32 %v914, 7
    %v916 = vsub.s32 %v913, %v915
    %v917 = vrot.slane %v907, %v916
    %v919 = vunpack.c.l.s4 1983009808
    %v920 = vunpack.c.0.s8 %v919
    %v921 = vlaneseq
    %v922 = vshrl.u32 %v921, 7
    %v923 = vsub.s32 %v920, %v922
    %v924 = vrot.slane %v908, %v923
    %v926 = vunpack.c.l.s4 1983009808
    %v927 = vunpack.c.0.s8 %v926
    %v928 = vlaneseq
    %v929 = vshrl.u32 %v928, 7
    %v930 = vsub.s32 %v927, %v929
    %v931 = vrot.slane %v909, %v930
    %v933 = vunpack.c.l.s4 1983009808
    %v934 = vunpack.c.0.s8 %v933
    %v935 = vlaneseq
    %v936 = vshrl.u32 %v935, 7
    %v937 = vsub.s32 %v934, %v936
    %v938 = vrot.slane %v910, %v937
    %v939 = vcombine.low %v917, %v931
    %v940 = vcombine.high %v917, %v931
    %v941 = vcombine.low %v924, %v938
    %v942 = vcombine.high %v924, %v938
    %v943 = vcombine.low %v140, %v142
    %v944 = vcombine.high %v140, %v142
    %v945 = vcombine.low %v144, %v146
    %v946 = vcombine.high %v144, %v146
    %v948 = vunpack.c.l.s4 1983009808
    %v949 = vunpack.c.0.s8 %v948
    %v950 = vlaneseq
    %v951 = vshrl.u32 %v950, 7
    %v952 = vsub.s32 %v949, %v951
    %v953 = vrot.slane %v943, %v952
    %v955 = vunpack.c.l.s4 1983009808
    %v956 = vunpack.c.0.s8 %v955
    %v957 = vlaneseq
    %v958 = vshrl.u32 %v957, 7
    %v959 = vsub.s32 %v956, %v958
    %v960 = vrot.slane %v944, %v959
    %v962 = vunpack.c.l.s4 1983009808
    %v963 = vunpack.c.0.s8 %v962
    %v964 = vlaneseq
    %v965 = vshrl.u32 %v964, 7
    %v966 = vsub.s32 %v963, %v965
    %v967 = vrot.slane %v945, %v966
    %v969 = vunpack.c.l.s4 1983009808
    %v970 = vunpack.c.0.s8 %v969
    %v971 = vlaneseq
    %v972 = vshrl.u32 %v971, 7
    %v973 = vsub.s32 %v970, %v972
    %v974 = vrot.slane %v946, %v973
    %v975 = vcombine.low %v953, %v967
    %v976 = vcombine.high %v953, %v967
    %v977 = vcombine.low %v960, %v974
    %v978 = vcombine.high %v960, %v974
    %v979 = vcombine.low %v147, %v149
    %v980 = vcombine.high %v147, %v149
    %v981 = vcombine.low %v151, %v153
    %v982 = vcombine.high %v151, %v153
    %v984 = vunpack.c.l.s4 1983009808
    %v985 = vunpack.c.0.s8 %v984
    %v986 = vlaneseq
    %v987 = vshrl.u32 %v986, 7
    %v988 = vsub.s32 %v985, %v987
    %v989 = vrot.slane %v979, %v988
    %v991 = vunpack.c.l.s4 1983009808
    %v992 = vunpack.c.0.s8 %v991
    %v993 = vlaneseq
    %v994 = vshrl.u32 %v993, 7
    %v995 = vsub.s32 %v992, %v994
    %v996 = vrot.slane %v980, %v995
    %v998 = vunpack.c.l.s4 1983009808
    %v999 = vunpack.c.0.s8 %v998
    %v1000 = vlaneseq
    %v1001 = vshrl.u32 %v1000, 7
    %v1002 = vsub.s32 %v999, %v1001
    %v1003 = vrot.slane %v981, %v1002
    %v1005 = vunpack.c.l.s4 1983009808
    %v1006 = vunpack.c.0.s8 %v1005
    %v1007 = vlaneseq
    %v1008 = vshrl.u32 %v1007, 7
    %v1009 = vsub.s32 %v1006, %v1008
    %v1010 = vrot.slane %v982, %v1009
    %v1011 = vcombine.low %v989, %v1003
    %v1012 = vcombine.high %v989, %v1003
    %v1013 = vcombine.low %v996, %v1010
    %v1014 = vcombine.high %v996, %v1010
    %v1015 = vcombine.low %v148, %v150
    %v1016 = vcombine.high %v148, %v150
    %v1017 = vcombine.low %v152, %v154
    %v1018 = vcombine.high %v152, %v154
    %v1020 = vunpack.c.l.s4 1983009808
    %v1021 = vunpack.c.0.s8 %v1020
    %v1022 = vlaneseq
    %v1023 = vshrl.u32 %v1022, 7
    %v1024 = vsub.s32 %v1021, %v1023
    %v1025 = vrot.slane %v1015, %v1024
    %v1027 = vunpack.c.l.s4 1983009808
    %v1028 = vunpack.c.0.s8 %v1027
    %v1029 = vlaneseq
    %v1030 = vshrl.u32 %v1029, 7
    %v1031 = vsub.s32 %v1028, %v1030
    %v1032 = vrot.slane %v1016, %v1031
    %v1034 = vunpack.c.l.s4 1983009808
    %v1035 = vunpack.c.0.s8 %v1034
    %v1036 = vlaneseq
    %v1037 = vshrl.u32 %v1036, 7
    %v1038 = vsub.s32 %v1035, %v1037
    %v1039 = vrot.slane %v1017, %v1038
    %v1041 = vunpack.c.l.s4 1983009808
    %v1042 = vunpack.c.0.s8 %v1041
    %v1043 = vlaneseq
    %v1044 = vshrl.u32 %v1043, 7
    %v1045 = vsub.s32 %v1042, %v1044
    %v1046 = vrot.slane %v1018, %v1045
    %v1047 = vcombine.low %v1025, %v1039
    %v1048 = vcombine.high %v1025, %v1039
    %v1049 = vcombine.low %v1032, %v1046
    %v1050 = vcombine.high %v1032, %v1046
    %v1051 = vcombine.low %v155, %v157
    %v1052 = vcombine.high %v155, %v157
    %v1053 = vcombine.low %v159, %v161
    %v1054 = vcombine.high %v159, %v161
    %v1056 = vunpack.c.l.s4 1983009808
    %v1057 = vunpack.c.0.s8 %v1056
    %v1058 = vlaneseq
    %v1059 = vshrl.u32 %v1058, 7
    %v1060 = vsub.s32 %v1057, %v1059
    %v1061 = vrot.slane %v1051, %v1060
    %v1063 = vunpack.c.l.s4 1983009808
    %v1064 = vunpack.c.0.s8 %v1063
    %v1065 = vlaneseq
    %v1066 = vshrl.u32 %v1065, 7
    %v1067 = vsub.s32 %v1064, %v1066
    %v1068 = vrot.slane %v1052, %v1067
    %v1070 = vunpack.c.l.s4 1983009808
    %v1071 = vunpack.c.0.s8 %v1070
    %v1072 = vlaneseq
    %v1073 = vshrl.u32 %v1072, 7
    %v1074 = vsub.s32 %v1071, %v1073
    %v1075 = vrot.slane %v1053, %v1074
    %v1077 = vunpack.c.l.s4 1983009808
    %v1078 = vunpack.c.0.s8 %v1077
    %v1079 = vlaneseq
    %v1080 = vshrl.u32 %v1079, 7
    %v1081 = vsub.s32 %v1078, %v1080
    %v1082 = vrot.slane %v1054, %v1081
    %v1083 = vcombine.low %v1061, %v1075
    %v1084 = vcombine.high %v1061, %v1075
    %v1085 = vcombine.low %v1068, %v1082
    %v1086 = vcombine.high %v1068, %v1082
    %v1087 = vcombine.low %v156, %v158
    %v1088 = vcombine.high %v156, %v158
    %v1089 = vcombine.low %v160, %v162
    %v1090 = vcombine.high %v160, %v162
    %v1092 = vunpack.c.l.s4 1983009808
    %v1093 = vunpack.c.0.s8 %v1092
    %v1094 = vlaneseq
    %v1095 = vshrl.u32 %v1094, 7
    %v1096 = vsub.s32 %v1093, %v1095
    %v1097 = vrot.slane %v1087, %v1096
    %v1099 = vunpack.c.l.s4 1983009808
    %v1100 = vunpack.c.0.s8 %v1099
    %v1101 = vlaneseq
    %v1102 = vshrl.u32 %v1101, 7
    %v1103 = vsub.s32 %v1100, %v1102
    %v1104 = vrot.slane %v1088, %v1103
    %v1106 = vunpack.c.l.s4 1983009808
    %v1107 = vunpack.c.0.s8 %v1106
    %v1108 = vlaneseq
    %v1109 = vshrl.u32 %v1108, 7
    %v1110 = vsub.s32 %v1107, %v1109
    %v1111 = vrot.slane %v1089, %v1110
    %v1113 = vunpack.c.l.s4 1983009808
    %v1114 = vunpack.c.0.s8 %v1113
    %v1115 = vlaneseq
    %v1116 = vshrl.u32 %v1115, 7
    %v1117 = vsub.s32 %v1114, %v1116
    %v1118 = vrot.slane %v1090, %v1117
    %v1119 = vcombine.low %v1097, %v1111
    %v1120 = vcombine.high %v1097, %v1111
    %v1121 = vcombine.low %v1104, %v1118
    %v1122 = vcombine.high %v1104, %v1118
    %v1123 = vcombine.low %v163, %v165
    %v1124 = vcombine.high %v163, %v165
    %v1125 = vcombine.low %v167, %v169
    %v1126 = vcombine.high %v167, %v169
    %v1128 = vunpack.c.l.s4 1983009808
    %v1129 = vunpack.c.0.s8 %v1128
    %v1130 = vlaneseq
    %v1131 = vshrl.u32 %v1130, 7
    %v1132 = vsub.s32 %v1129, %v1131
    %v1133 = vrot.slane %v1123, %v1132
    %v1135 = vunpack.c.l.s4 1983009808
    %v1136 = vunpack.c.0.s8 %v1135
    %v1137 = vlaneseq
    %v1138 = vshrl.u32 %v1137, 7
    %v1139 = vsub.s32 %v1136, %v1138
    %v1140 = vrot.slane %v1124, %v1139
    %v1142 = vunpack.c.l.s4 1983009808
    %v1143 = vunpack.c.0.s8 %v1142
    %v1144 = vlaneseq
    %v1145 = vshrl.u32 %v1144, 7
    %v1146 = vsub.s32 %v1143, %v1145
    %v1147 = vrot.slane %v1125, %v1146
    %v1149 = vunpack.c.l.s4 1983009808
    %v1150 = vunpack.c.0.s8 %v1149
    %v1151 = vlaneseq
    %v1152 = vshrl.u32 %v1151, 7
    %v1153 = vsub.s32 %v1150, %v1152
    %v1154 = vrot.slane %v1126, %v1153
    %v1155 = vcombine.low %v1133, %v1147
    %v1156 = vcombine.high %v1133, %v1147
    %v1157 = vcombine.low %v1140, %v1154
    %v1158 = vcombine.high %v1140, %v1154
    %v1159 = vcombine.low %v164, %v166
    %v1160 = vcombine.high %v164, %v166
    %v1161 = vcombine.low %v168, %v170
    %v1162 = vcombine.high %v168, %v170
    %v1164 = vunpack.c.l.s4 1983009808
    %v1165 = vunpack.c.0.s8 %v1164
    %v1166 = vlaneseq
    %v1167 = vshrl.u32 %v1166, 7
    %v1168 = vsub.s32 %v1165, %v1167
    %v1169 = vrot.slane %v1159, %v1168
    %v1171 = vunpack.c.l.s4 1983009808
    %v1172 = vunpack.c.0.s8 %v1171
    %v1173 = vlaneseq
    %v1174 = vshrl.u32 %v1173, 7
    %v1175 = vsub.s32 %v1172, %v1174
    %v1176 = vrot.slane %v1160, %v1175
    %v1178 = vunpack.c.l.s4 1983009808
    %v1179 = vunpack.c.0.s8 %v1178
    %v1180 = vlaneseq
    %v1181 = vshrl.u32 %v1180, 7
    %v1182 = vsub.s32 %v1179, %v1181
    %v1183 = vrot.slane %v1161, %v1182
    %v1185 = vunpack.c.l.s4 1983009808
    %v1186 = vunpack.c.0.s8 %v1185
    %v1187 = vlaneseq
    %v1188 = vshrl.u32 %v1187, 7
    %v1189 = vsub.s32 %v1186, %v1188
    %v1190 = vrot.slane %v1162, %v1189
    %v1191 = vcombine.low %v1169, %v1183
    %v1192 = vcombine.high %v1169, %v1183
    %v1193 = vcombine.low %v1176, %v1190
    %v1194 = vcombine.high %v1176, %v1190
    %v1195 = vcombine.low %v171, %v173
    %v1196 = vcombine.high %v171, %v173
    %v1197 = vcombine.low %v175, %v177
    %v1198 = vcombine.high %v175, %v177
    %v1200 = vunpack.c.l.s4 1983009808
    %v1201 = vunpack.c.0.s8 %v1200
    %v1202 = vlaneseq
    %v1203 = vshrl.u32 %v1202, 7
    %v1204 = vsub.s32 %v1201, %v1203
    %v1205 = vrot.slane %v1195, %v1204
    %v1207 = vunpack.c.l.s4 1983009808
    %v1208 = vunpack.c.0.s8 %v1207
    %v1209 = vlaneseq
    %v1210 = vshrl.u32 %v1209, 7
    %v1211 = vsub.s32 %v1208, %v1210
    %v1212 = vrot.slane %v1196, %v1211
    %v1214 = vunpack.c.l.s4 1983009808
    %v1215 = vunpack.c.0.s8 %v1214
    %v1216 = vlaneseq
    %v1217 = vshrl.u32 %v1216, 7
    %v1218 = vsub.s32 %v1215, %v1217
    %v1219 = vrot.slane %v1197, %v1218
    %v1221 = vunpack.c.l.s4 1983009808
    %v1222 = vunpack.c.0.s8 %v1221
    %v1223 = vlaneseq
    %v1224 = vshrl.u32 %v1223, 7
    %v1225 = vsub.s32 %v1222, %v1224
    %v1226 = vrot.slane %v1198, %v1225
    %v1227 = vcombine.low %v1205, %v1219
    %v1228 = vcombine.high %v1205, %v1219
    %v1229 = vcombine.low %v1212, %v1226
    %v1230 = vcombine.high %v1212, %v1226
    %v1231 = vcombine.low %v172, %v174
    %v1232 = vcombine.high %v172, %v174
    %v1233 = vcombine.low %v176, %v178
    %v1234 = vcombine.high %v176, %v178
    %v1236 = vunpack.c.l.s4 1983009808
    %v1237 = vunpack.c.0.s8 %v1236
    %v1238 = vlaneseq
    %v1239 = vshrl.u32 %v1238, 7
    %v1240 = vsub.s32 %v1237, %v1239
    %v1241 = vrot.slane %v1231, %v1240
    %v1243 = vunpack.c.l.s4 1983009808
    %v1244 = vunpack.c.0.s8 %v1243
    %v1245 = vlaneseq
    %v1246 = vshrl.u32 %v1245, 7
    %v1247 = vsub.s32 %v1244, %v1246
    %v1248 = vrot.slane %v1232, %v1247
    %v1250 = vunpack.c.l.s4 1983009808
    %v1251 = vunpack.c.0.s8 %v1250
    %v1252 = vlaneseq
    %v1253 = vshrl.u32 %v1252, 7
    %v1254 = vsub.s32 %v1251, %v1253
    %v1255 = vrot.slane %v1233, %v1254
    %v1257 = vunpack.c.l.s4 1983009808
    %v1258 = vunpack.c.0.s8 %v1257
    %v1259 = vlaneseq
    %v1260 = vshrl.u32 %v1259, 7
    %v1261 = vsub.s32 %v1258, %v1260
    %v1262 = vrot.slane %v1234, %v1261
    %v1263 = vcombine.low %v1241, %v1255
    %v1264 = vcombine.high %v1241, %v1255
    %v1265 = vcombine.low %v1248, %v1262
    %v1266 = vcombine.high %v1248, %v1262
    %v1267 = vcombine.low %v179, %v181
    %v1268 = vcombine.high %v179, %v181
    %v1269 = vcombine.low %v183, %v185
    %v1270 = vcombine.high %v183, %v185
    %v1272 = vunpack.c.l.s4 1983009808
    %v1273 = vunpack.c.0.s8 %v1272
    %v1274 = vlaneseq
    %v1275 = vshrl.u32 %v1274, 7
    %v1276 = vsub.s32 %v1273, %v1275
    %v1277 = vrot.slane %v1267, %v1276
    %v1279 = vunpack.c.l.s4 1983009808
    %v1280 = vunpack.c.0.s8 %v1279
    %v1281 = vlaneseq
    %v1282 = vshrl.u32 %v1281, 7
    %v1283 = vsub.s32 %v1280, %v1282
    %v1284 = vrot.slane %v1268, %v1283
    %v1286 = vunpack.c.l.s4 1983009808
    %v1287 = vunpack.c.0.s8 %v1286
    %v1288 = vlaneseq
    %v1289 = vshrl.u32 %v1288, 7
    %v1290 = vsub.s32 %v1287, %v1289
    %v1291 = vrot.slane %v1269, %v1290
    %v1293 = vunpack.c.l.s4 1983009808
    %v1294 = vunpack.c.0.s8 %v1293
    %v1295 = vlaneseq
    %v1296 = vshrl.u32 %v1295, 7
    %v1297 = vsub.s32 %v1294, %v1296
    %v1298 = vrot.slane %v1270, %v1297
    %v1299 = vcombine.low %v1277, %v1291
    %v1300 = vcombine.high %v1277, %v1291
    %v1301 = vcombine.low %v1284, %v1298
    %v1302 = vcombine.high %v1284, %v1298
    %v1303 = vcombine.low %v180, %v182
    %v1304 = vcombine.high %v180, %v182
    %v1305 = vcombine.low %v184, %v186
    %v1306 = vcombine.high %v184, %v186
    %v1308 = vunpack.c.l.s4 1983009808
    %v1309 = vunpack.c.0.s8 %v1308
    %v1310 = vlaneseq
    %v1311 = vshrl.u32 %v1310, 7
    %v1312 = vsub.s32 %v1309, %v1311
    %v1313 = vrot.slane %v1303, %v1312
    %v1315 = vunpack.c.l.s4 1983009808
    %v1316 = vunpack.c.0.s8 %v1315
    %v1317 = vlaneseq
    %v1318 = vshrl.u32 %v1317, 7
    %v1319 = vsub.s32 %v1316, %v1318
    %v1320 = vrot.slane %v1304, %v1319
    %v1322 = vunpack.c.l.s4 1983009808
    %v1323 = vunpack.c.0.s8 %v1322
    %v1324 = vlaneseq
    %v1325 = vshrl.u32 %v1324, 7
    %v1326 = vsub.s32 %v1323, %v1325
    %v1327 = vrot.slane %v1305, %v1326
    %v1329 = vunpack.c.l.s4 1983009808
    %v1330 = vunpack.c.0.s8 %v1329
    %v1331 = vlaneseq
    %v1332 = vshrl.u32 %v1331, 7
    %v1333 = vsub.s32 %v1330, %v1332
    %v1334 = vrot.slane %v1306, %v1333
    %v1335 = vcombine.low %v1313, %v1327
    %v1336 = vcombine.high %v1313, %v1327
    %v1337 = vcombine.low %v1320, %v1334
    %v1338 = vcombine.high %v1320, %v1334
    %v1339 = vcombine.low %v187, %v189
    %v1340 = vcombine.high %v187, %v189
    %v1341 = vcombine.low %v191, %v193
    %v1342 = vcombine.high %v191, %v193
    %v1344 = vunpack.c.l.s4 1983009808
    %v1345 = vunpack.c.0.s8 %v1344
    %v1346 = vlaneseq
    %v1347 = vshrl.u32 %v1346, 7
    %v1348 = vsub.s32 %v1345, %v1347
    %v1349 = vrot.slane %v1339, %v1348
    %v1351 = vunpack.c.l.s4 1983009808
    %v1352 = vunpack.c.0.s8 %v1351
    %v1353 = vlaneseq
    %v1354 = vshrl.u32 %v1353, 7
    %v1355 = vsub.s32 %v1352, %v1354
    %v1356 = vrot.slane %v1340, %v1355
    %v1358 = vunpack.c.l.s4 1983009808
    %v1359 = vunpack.c.0.s8 %v1358
    %v1360 = vlaneseq
    %v1361 = vshrl.u32 %v1360, 7
    %v1362 = vsub.s32 %v1359, %v1361
    %v1363 = vrot.slane %v1341, %v1362
    %v1365 = vunpack.c.l.s4 1983009808
    %v1366 = vunpack.c.0.s8 %v1365
    %v1367 = vlaneseq
    %v1368 = vshrl.u32 %v1367, 7
    %v1369 = vsub.s32 %v1366, %v1368
    %v1370 = vrot.slane %v1342, %v1369
    %v1371 = vcombine.low %v1349, %v1363
    %v1372 = vcombine.high %v1349, %v1363
    %v1373 = vcombine.low %v1356, %v1370
    %v1374 = vcombine.high %v1356, %v1370
    %v1375 = vcombine.low %v188, %v190
    %v1376 = vcombine.high %v188, %v190
    %v1377 = vcombine.low %v192, %v194
    %v1378 = vcombine.high %v192, %v194
    %v1380 = vunpack.c.l.s4 1983009808
    %v1381 = vunpack.c.0.s8 %v1380
    %v1382 = vlaneseq
    %v1383 = vshrl.u32 %v1382, 7
    %v1384 = vsub.s32 %v1381, %v1383
    %v1385 = vrot.slane %v1375, %v1384
    %v1387 = vunpack.c.l.s4 1983009808
    %v1388 = vunpack.c.0.s8 %v1387
    %v1389 = vlaneseq
    %v1390 = vshrl.u32 %v1389, 7
    %v1391 = vsub.s32 %v1388, %v1390
    %v1392 = vrot.slane %v1376, %v1391
    %v1394 = vunpack.c.l.s4 1983009808
    %v1395 = vunpack.c.0.s8 %v1394
    %v1396 = vlaneseq
    %v1397 = vshrl.u32 %v1396, 7
    %v1398 = vsub.s32 %v1395, %v1397
    %v1399 = vrot.slane %v1377, %v1398
    %v1401 = vunpack.c.l.s4 1983009808
    %v1402 = vunpack.c.0.s8 %v1401
    %v1403 = vlaneseq
    %v1404 = vshrl.u32 %v1403, 7
    %v1405 = vsub.s32 %v1402, %v1404
    %v1406 = vrot.slane %v1378, %v1405
    %v1407 = vcombine.low %v1385, %v1399
    %v1408 = vcombine.high %v1385, %v1399
    %v1409 = vcombine.low %v1392, %v1406
    %v1410 = vcombine.high %v1392, %v1406
    %v1411 = vcombine.low %v195, %v197
    %v1412 = vcombine.high %v195, %v197
    %v1413 = vcombine.low %v199, %v201
    %v1414 = vcombine.high %v199, %v201
    %v1416 = vunpack.c.l.s4 1983009808
    %v1417 = vunpack.c.0.s8 %v1416
    %v1418 = vlaneseq
    %v1419 = vshrl.u32 %v1418, 7
    %v1420 = vsub.s32 %v1417, %v1419
    %v1421 = vrot.slane %v1411, %v1420
    %v1423 = vunpack.c.l.s4 1983009808
    %v1424 = vunpack.c.0.s8 %v1423
    %v1425 = vlaneseq
    %v1426 = vshrl.u32 %v1425, 7
    %v1427 = vsub.s32 %v1424, %v1426
    %v1428 = vrot.slane %v1412, %v1427
    %v1430 = vunpack.c.l.s4 1983009808
    %v1431 = vunpack.c.0.s8 %v1430
    %v1432 = vlaneseq
    %v1433 = vshrl.u32 %v1432, 7
    %v1434 = vsub.s32 %v1431, %v1433
    %v1435 = vrot.slane %v1413, %v1434
    %v1437 = vunpack.c.l.s4 1983009808
    %v1438 = vunpack.c.0.s8 %v1437
    %v1439 = vlaneseq
    %v1440 = vshrl.u32 %v1439, 7
    %v1441 = vsub.s32 %v1438, %v1440
    %v1442 = vrot.slane %v1414, %v1441
    %v1443 = vcombine.low %v1421, %v1435
    %v1444 = vcombine.high %v1421, %v1435
    %v1445 = vcombine.low %v1428, %v1442
    %v1446 = vcombine.high %v1428, %v1442
    %v1447 = vcombine.low %v196, %v198
    %v1448 = vcombine.high %v196, %v198
    %v1449 = vcombine.low %v200, %v202
    %v1450 = vcombine.high %v200, %v202
    %v1452 = vunpack.c.l.s4 1983009808
    %v1453 = vunpack.c.0.s8 %v1452
    %v1454 = vlaneseq
    %v1455 = vshrl.u32 %v1454, 7
    %v1456 = vsub.s32 %v1453, %v1455
    %v1457 = vrot.slane %v1447, %v1456
    %v1459 = vunpack.c.l.s4 1983009808
    %v1460 = vunpack.c.0.s8 %v1459
    %v1461 = vlaneseq
    %v1462 = vshrl.u32 %v1461, 7
    %v1463 = vsub.s32 %v1460, %v1462
    %v1464 = vrot.slane %v1448, %v1463
    %v1466 = vunpack.c.l.s4 1983009808
    %v1467 = vunpack.c.0.s8 %v1466
    %v1468 = vlaneseq
    %v1469 = vshrl.u32 %v1468, 7
    %v1470 = vsub.s32 %v1467, %v1469
    %v1471 = vrot.slane %v1449, %v1470
    %v1473 = vunpack.c.l.s4 1983009808
    %v1474 = vunpack.c.0.s8 %v1473
    %v1475 = vlaneseq
    %v1476 = vshrl.u32 %v1475, 7
    %v1477 = vsub.s32 %v1474, %v1476
    %v1478 = vrot.slane %v1450, %v1477
    %v1479 = vcombine.low %v1457, %v1471
    %v1480 = vcombine.high %v1457, %v1471
    %v1481 = vcombine.low %v1464, %v1478
    %v1482 = vcombine.high %v1464, %v1478
    %v1611 = vpack.c.bf16 %v435, %v363
    %v1612 = vpack.c.bf16 %v436, %v364
    %v1613 = vpack.c.bf16 %v437, %v365
    %v1614 = vpack.c.bf16 %v438, %v366
    %v1615 = vpack.c.bf16 %v471, %v399
    %v1616 = vpack.c.bf16 %v472, %v400
    %v1617 = vpack.c.bf16 %v473, %v401
    %v1618 = vpack.c.bf16 %v474, %v402
    %v1619 = vpack.c.bf16 %v579, %v507
    %v1620 = vpack.c.bf16 %v580, %v508
    %v1621 = vpack.c.bf16 %v581, %v509
    %v1622 = vpack.c.bf16 %v582, %v510
    %v1623 = vpack.c.bf16 %v615, %v543
    %v1624 = vpack.c.bf16 %v616, %v544
    %v1625 = vpack.c.bf16 %v617, %v545
    %v1626 = vpack.c.bf16 %v618, %v546
    %v1627 = vpack.c.bf16 %v723, %v651
    %v1628 = vpack.c.bf16 %v724, %v652
    %v1629 = vpack.c.bf16 %v725, %v653
    %v1630 = vpack.c.bf16 %v726, %v654
    %v1631 = vpack.c.bf16 %v759, %v687
    %v1632 = vpack.c.bf16 %v760, %v688
    %v1633 = vpack.c.bf16 %v761, %v689
    %v1634 = vpack.c.bf16 %v762, %v690
    %v1635 = vpack.c.bf16 %v867, %v795
    %v1636 = vpack.c.bf16 %v868, %v796
    %v1637 = vpack.c.bf16 %v869, %v797
    %v1638 = vpack.c.bf16 %v870, %v798
    %v1639 = vpack.c.bf16 %v903, %v831
    %v1640 = vpack.c.bf16 %v904, %v832
    %v1641 = vpack.c.bf16 %v905, %v833
    %v1642 = vpack.c.bf16 %v906, %v834
    %v1643 = vpack.c.bf16 %v1011, %v939
    %v1644 = vpack.c.bf16 %v1012, %v940
    %v1645 = vpack.c.bf16 %v1013, %v941
    %v1646 = vpack.c.bf16 %v1014, %v942
    %v1647 = vpack.c.bf16 %v1047, %v975
    %v1648 = vpack.c.bf16 %v1048, %v976
    %v1649 = vpack.c.bf16 %v1049, %v977
    %v1650 = vpack.c.bf16 %v1050, %v978
    %v1651 = vpack.c.bf16 %v1155, %v1083
    %v1652 = vpack.c.bf16 %v1156, %v1084
    %v1653 = vpack.c.bf16 %v1157, %v1085
    %v1654 = vpack.c.bf16 %v1158, %v1086
    %v1655 = vpack.c.bf16 %v1191, %v1119
    %v1656 = vpack.c.bf16 %v1192, %v1120
    %v1657 = vpack.c.bf16 %v1193, %v1121
    %v1658 = vpack.c.bf16 %v1194, %v1122
    %v1659 = vpack.c.bf16 %v1299, %v1227
    %v1660 = vpack.c.bf16 %v1300, %v1228
    %v1661 = vpack.c.bf16 %v1301, %v1229
    %v1662 = vpack.c.bf16 %v1302, %v1230
    %v1663 = vpack.c.bf16 %v1335, %v1263
    %v1664 = vpack.c.bf16 %v1336, %v1264
    %v1665 = vpack.c.bf16 %v1337, %v1265
    %v1666 = vpack.c.bf16 %v1338, %v1266
    %v1667 = vpack.c.bf16 %v1443, %v1371
    %v1668 = vpack.c.bf16 %v1444, %v1372
    %v1669 = vpack.c.bf16 %v1445, %v1373
    %v1670 = vpack.c.bf16 %v1446, %v1374
    %v1671 = vpack.c.bf16 %v1479, %v1407
    %v1672 = vpack.c.bf16 %v1480, %v1408
    %v1673 = vpack.c.bf16 %v1481, %v1409
    %v1674 = vpack.c.bf16 %v1482, %v1410
    %v1675 = vld [vmem:[#allocation5] sm:$0xf]
    %v1676 = vld [vmem:[#allocation5 + $0x4] sm:$0xf]
    %v1677 = vld [vmem:[#allocation5 + $0x8] sm:$0xf]
    %v1678 = vld [vmem:[#allocation5 + $0xc] sm:$0xf]
    %v1679 = vld [vmem:[#allocation5 + $0x10] sm:$0xf]
    %v1680 = vld [vmem:[#allocation5 + $0x14] sm:$0xf]
    %v1681 = vld [vmem:[#allocation5 + $0x18] sm:$0xf]
    %v1682 = vld [vmem:[#allocation5 + $0x1c] sm:$0xf]
    %v1683 = vld [vmem:[#allocation5 + $0x20] sm:$0xf]
    %v1684 = vld [vmem:[#allocation5 + $0x24] sm:$0xf]
    %v1685 = vld [vmem:[#allocation5 + $0x28] sm:$0xf]
    %v1686 = vld [vmem:[#allocation5 + $0x2c] sm:$0xf]
    %v1687 = vld [vmem:[#allocation5 + $0x30] sm:$0xf]
    %v1688 = vld [vmem:[#allocation5 + $0x34] sm:$0xf]
    %v1689 = vld [vmem:[#allocation5 + $0x38] sm:$0xf]
    %v1690 = vld [vmem:[#allocation5 + $0x3c] sm:$0xf]
    %v1691 = vld [vmem:[#allocation5 + $0x40] sm:$0xf]
    %v1692 = vld [vmem:[#allocation5 + $0x44] sm:$0xf]
    %v1693 = vld [vmem:[#allocation5 + $0x48] sm:$0xf]
    %v1694 = vld [vmem:[#allocation5 + $0x4c] sm:$0xf]
    %v1695 = vld [vmem:[#allocation5 + $0x50] sm:$0xf]
    %v1696 = vld [vmem:[#allocation5 + $0x54] sm:$0xf]
    %v1697 = vld [vmem:[#allocation5 + $0x58] sm:$0xf]
    %v1698 = vld [vmem:[#allocation5 + $0x5c] sm:$0xf]
    %v1699 = vld [vmem:[#allocation5 + $0x60] sm:$0xf]
    %v1700 = vld [vmem:[#allocation5 + $0x64] sm:$0xf]
    %v1701 = vld [vmem:[#allocation5 + $0x68] sm:$0xf]
    %v1702 = vld [vmem:[#allocation5 + $0x6c] sm:$0xf]
    %v1703 = vld [vmem:[#allocation5 + $0x70] sm:$0xf]
    %v1704 = vld [vmem:[#allocation5 + $0x74] sm:$0xf]
    %v1705 = vld [vmem:[#allocation5 + $0x78] sm:$0xf]
    %v1706 = vld [vmem:[#allocation5 + $0x7c] sm:$0xf]
    %v1707 = vld [vmem:[#allocation5 + $0x80] sm:$0xf]
    %v1708 = vld [vmem:[#allocation5 + $0x84] sm:$0xf]
    %v1709 = vld [vmem:[#allocation5 + $0x88] sm:$0xf]
    %v1710 = vld [vmem:[#allocation5 + $0x8c] sm:$0xf]
    %v1711 = vld [vmem:[#allocation5 + $0x90] sm:$0xf]
    %v1712 = vld [vmem:[#allocation5 + $0x94] sm:$0xf]
    %v1713 = vld [vmem:[#allocation5 + $0x98] sm:$0xf]
    %v1714 = vld [vmem:[#allocation5 + $0x9c] sm:$0xf]
    %v1715 = vld [vmem:[#allocation5 + $0xa0] sm:$0xf]
    %v1716 = vld [vmem:[#allocation5 + $0xa4] sm:$0xf]
    %v1717 = vld [vmem:[#allocation5 + $0xa8] sm:$0xf]
    %v1718 = vld [vmem:[#allocation5 + $0xac] sm:$0xf]
    %v1719 = vld [vmem:[#allocation5 + $0xb0] sm:$0xf]
    %v1720 = vld [vmem:[#allocation5 + $0xb4] sm:$0xf]
    %v1721 = vld [vmem:[#allocation5 + $0xb8] sm:$0xf]
    %v1722 = vld [vmem:[#allocation5 + $0xbc] sm:$0xf]
    %v1723 = vld [vmem:[#allocation5 + $0xc0] sm:$0xf]
    %v1724 = vld [vmem:[#allocation5 + $0xc4] sm:$0xf]
    %v1725 = vld [vmem:[#allocation5 + $0xc8] sm:$0xf]
    %v1726 = vld [vmem:[#allocation5 + $0xcc] sm:$0xf]
    %v1727 = vld [vmem:[#allocation5 + $0xd0] sm:$0xf]
    %v1728 = vld [vmem:[#allocation5 + $0xd4] sm:$0xf]
    %v1729 = vld [vmem:[#allocation5 + $0xd8] sm:$0xf]
    %v1730 = vld [vmem:[#allocation5 + $0xdc] sm:$0xf]
    %v1731 = vld [vmem:[#allocation5 + $0xe0] sm:$0xf]
    %v1732 = vld [vmem:[#allocation5 + $0xe4] sm:$0xf]
    %v1733 = vld [vmem:[#allocation5 + $0xe8] sm:$0xf]
    %v1734 = vld [vmem:[#allocation5 + $0xec] sm:$0xf]
    %v1735 = vld [vmem:[#allocation5 + $0xf0] sm:$0xf]
    %v1736 = vld [vmem:[#allocation5 + $0xf4] sm:$0xf]
    %v1737 = vld [vmem:[#allocation5 + $0xf8] sm:$0xf]
    %v1738 = vld [vmem:[#allocation5 + $0xfc] sm:$0xf]
    %v1739 = vld [vmem:[#allocation5 + $0x100] sm:$0xf]
    %v1740 = vld [vmem:[#allocation5 + $0x104] sm:$0xf]
    %v1741 = vld [vmem:[#allocation5 + $0x108] sm:$0xf]
    %v1742 = vld [vmem:[#allocation5 + $0x10c] sm:$0xf]
    %v1743 = vld [vmem:[#allocation5 + $0x110] sm:$0xf]
    %v1744 = vld [vmem:[#allocation5 + $0x114] sm:$0xf]
    %v1745 = vld [vmem:[#allocation5 + $0x118] sm:$0xf]
    %v1746 = vld [vmem:[#allocation5 + $0x11c] sm:$0xf]
    %v1747 = vld [vmem:[#allocation5 + $0x120] sm:$0xf]
    %v1748 = vld [vmem:[#allocation5 + $0x124] sm:$0xf]
    %v1749 = vld [vmem:[#allocation5 + $0x128] sm:$0xf]
    %v1750 = vld [vmem:[#allocation5 + $0x12c] sm:$0xf]
    %v1751 = vld [vmem:[#allocation5 + $0x130] sm:$0xf]
    %v1752 = vld [vmem:[#allocation5 + $0x134] sm:$0xf]
    %v1753 = vld [vmem:[#allocation5 + $0x138] sm:$0xf]
    %v1754 = vld [vmem:[#allocation5 + $0x13c] sm:$0xf]
    %v1755 = vld [vmem:[#allocation5 + $0x140] sm:$0xf]
    %v1756 = vld [vmem:[#allocation5 + $0x144] sm:$0xf]
    %v1757 = vld [vmem:[#allocation5 + $0x148] sm:$0xf]
    %v1758 = vld [vmem:[#allocation5 + $0x14c] sm:$0xf]
    %v1759 = vld [vmem:[#allocation5 + $0x150] sm:$0xf]
    %v1760 = vld [vmem:[#allocation5 + $0x154] sm:$0xf]
    %v1761 = vld [vmem:[#allocation5 + $0x158] sm:$0xf]
    %v1762 = vld [vmem:[#allocation5 + $0x15c] sm:$0xf]
    %v1763 = vld [vmem:[#allocation5 + $0x160] sm:$0xf]
    %v1764 = vld [vmem:[#allocation5 + $0x164] sm:$0xf]
    %v1765 = vld [vmem:[#allocation5 + $0x168] sm:$0xf]
    %v1766 = vld [vmem:[#allocation5 + $0x16c] sm:$0xf]
    %v1767 = vld [vmem:[#allocation5 + $0x170] sm:$0xf]
    %v1768 = vld [vmem:[#allocation5 + $0x174] sm:$0xf]
    %v1769 = vld [vmem:[#allocation5 + $0x178] sm:$0xf]
    %v1770 = vld [vmem:[#allocation5 + $0x17c] sm:$0xf]
    %v1771 = vld [vmem:[#allocation5 + $0x180] sm:$0xf]
    %v1772 = vld [vmem:[#allocation5 + $0x184] sm:$0xf]
    %v1773 = vld [vmem:[#allocation5 + $0x188] sm:$0xf]
    %v1774 = vld [vmem:[#allocation5 + $0x18c] sm:$0xf]
    %v1775 = vld [vmem:[#allocation5 + $0x190] sm:$0xf]
    %v1776 = vld [vmem:[#allocation5 + $0x194] sm:$0xf]
    %v1777 = vld [vmem:[#allocation5 + $0x198] sm:$0xf]
    %v1778 = vld [vmem:[#allocation5 + $0x19c] sm:$0xf]
    %v1779 = vld [vmem:[#allocation5 + $0x1a0] sm:$0xf]
    %v1780 = vld [vmem:[#allocation5 + $0x1a4] sm:$0xf]
    %v1781 = vld [vmem:[#allocation5 + $0x1a8] sm:$0xf]
    %v1782 = vld [vmem:[#allocation5 + $0x1ac] sm:$0xf]
    %v1783 = vld [vmem:[#allocation5 + $0x1b0] sm:$0xf]
    %v1784 = vld [vmem:[#allocation5 + $0x1b4] sm:$0xf]
    %v1785 = vld [vmem:[#allocation5 + $0x1b8] sm:$0xf]
    %v1786 = vld [vmem:[#allocation5 + $0x1bc] sm:$0xf]
    %v1787 = vld [vmem:[#allocation5 + $0x1c0] sm:$0xf]
    %v1788 = vld [vmem:[#allocation5 + $0x1c4] sm:$0xf]
    %v1789 = vld [vmem:[#allocation5 + $0x1c8] sm:$0xf]
    %v1790 = vld [vmem:[#allocation5 + $0x1cc] sm:$0xf]
    %v1791 = vld [vmem:[#allocation5 + $0x1d0] sm:$0xf]
    %v1792 = vld [vmem:[#allocation5 + $0x1d4] sm:$0xf]
    %v1793 = vld [vmem:[#allocation5 + $0x1d8] sm:$0xf]
    %v1794 = vld [vmem:[#allocation5 + $0x1dc] sm:$0xf]
    %v1795 = vld [vmem:[#allocation5 + $0x1e0] sm:$0xf]
    %v1796 = vld [vmem:[#allocation5 + $0x1e4] sm:$0xf]
    %v1797 = vld [vmem:[#allocation5 + $0x1e8] sm:$0xf]
    %v1798 = vld [vmem:[#allocation5 + $0x1ec] sm:$0xf]
    %v1799 = vld [vmem:[#allocation5 + $0x1f0] sm:$0xf]
    %v1800 = vld [vmem:[#allocation5 + $0x1f4] sm:$0xf]
    %v1801 = vld [vmem:[#allocation5 + $0x1f8] sm:$0xf]
    %v1802 = vld [vmem:[#allocation5 + $0x1fc] sm:$0xf]
    %v1803 = vld [vmem:[%s2] sm:$0x1]
    %v1805 = vlaneseq
    %v1806 = vshrl.u32 %v1805, 7
    %v1807 = vsub.s32 0, %v1806
    %v1808 = vrot.slane %v1803, %v1807
    %v1938 = vunpack.c.l.b16 %v1675
    %v1939 = vunpack.c.l.b16 %v1676
    %v1940 = vunpack.c.l.b16 %v1677
    %v1941 = vunpack.c.l.b16 %v1678
    %v1942 = vunpack.c.l.b16 %v1679
    %v1943 = vunpack.c.l.b16 %v1680
    %v1944 = vunpack.c.l.b16 %v1681
    %v1945 = vunpack.c.l.b16 %v1682
    %v1946 = vunpack.c.l.b16 %v1683
    %v1947 = vunpack.c.l.b16 %v1684
    %v1948 = vunpack.c.l.b16 %v1685
    %v1949 = vunpack.c.l.b16 %v1686
    %v1950 = vunpack.c.l.b16 %v1687
    %v1951 = vunpack.c.l.b16 %v1688
    %v1952 = vunpack.c.l.b16 %v1689
    %v1953 = vunpack.c.l.b16 %v1690
    %v1954 = vunpack.c.l.b16 %v1691
    %v1955 = vunpack.c.l.b16 %v1692
    %v1956 = vunpack.c.l.b16 %v1693
    %v1957 = vunpack.c.l.b16 %v1694
    %v1958 = vunpack.c.l.b16 %v1695
    %v1959 = vunpack.c.l.b16 %v1696
    %v1960 = vunpack.c.l.b16 %v1697
    %v1961 = vunpack.c.l.b16 %v1698
    %v1962 = vunpack.c.l.b16 %v1699
    %v1963 = vunpack.c.l.b16 %v1700
    %v1964 = vunpack.c.l.b16 %v1701
    %v1965 = vunpack.c.l.b16 %v1702
    %v1966 = vunpack.c.l.b16 %v1703
    %v1967 = vunpack.c.l.b16 %v1704
    %v1968 = vunpack.c.l.b16 %v1705
    %v1969 = vunpack.c.l.b16 %v1706
    %v1970 = vunpack.c.l.b16 %v1707
    %v1971 = vunpack.c.l.b16 %v1708
    %v1972 = vunpack.c.l.b16 %v1709
    %v1973 = vunpack.c.l.b16 %v1710
    %v1974 = vunpack.c.l.b16 %v1711
    %v1975 = vunpack.c.l.b16 %v1712
    %v1976 = vunpack.c.l.b16 %v1713
    %v1977 = vunpack.c.l.b16 %v1714
    %v1978 = vunpack.c.l.b16 %v1715
    %v1979 = vunpack.c.l.b16 %v1716
    %v1980 = vunpack.c.l.b16 %v1717
    %v1981 = vunpack.c.l.b16 %v1718
    %v1982 = vunpack.c.l.b16 %v1719
    %v1983 = vunpack.c.l.b16 %v1720
    %v1984 = vunpack.c.l.b16 %v1721
    %v1985 = vunpack.c.l.b16 %v1722
    %v1986 = vunpack.c.l.b16 %v1723
    %v1987 = vunpack.c.l.b16 %v1724
    %v1988 = vunpack.c.l.b16 %v1725
    %v1989 = vunpack.c.l.b16 %v1726
    %v1990 = vunpack.c.l.b16 %v1727
    %v1991 = vunpack.c.l.b16 %v1728
    %v1992 = vunpack.c.l.b16 %v1729
    %v1993 = vunpack.c.l.b16 %v1730
    %v1994 = vunpack.c.l.b16 %v1731
    %v1995 = vunpack.c.l.b16 %v1732
    %v1996 = vunpack.c.l.b16 %v1733
    %v1997 = vunpack.c.l.b16 %v1734
    %v1998 = vunpack.c.l.b16 %v1735
    %v1999 = vunpack.c.l.b16 %v1736
    %v2000 = vunpack.c.l.b16 %v1737
    %v2001 = vunpack.c.l.b16 %v1738
    %v2002 = vunpack.c.l.b16 %v1739
    %v2003 = vunpack.c.l.b16 %v1740
    %v2004 = vunpack.c.l.b16 %v1741
    %v2005 = vunpack.c.l.b16 %v1742
    %v2006 = vunpack.c.l.b16 %v1743
    %v2007 = vunpack.c.l.b16 %v1744
    %v2008 = vunpack.c.l.b16 %v1745
    %v2009 = vunpack.c.l.b16 %v1746
    %v2010 = vunpack.c.l.b16 %v1747
    %v2011 = vunpack.c.l.b16 %v1748
    %v2012 = vunpack.c.l.b16 %v1749
    %v2013 = vunpack.c.l.b16 %v1750
    %v2014 = vunpack.c.l.b16 %v1751
    %v2015 = vunpack.c.l.b16 %v1752
    %v2016 = vunpack.c.l.b16 %v1753
    %v2017 = vunpack.c.l.b16 %v1754
    %v2018 = vunpack.c.l.b16 %v1755
    %v2019 = vunpack.c.l.b16 %v1756
    %v2020 = vunpack.c.l.b16 %v1757
    %v2021 = vunpack.c.l.b16 %v1758
    %v2022 = vunpack.c.l.b16 %v1759
    %v2023 = vunpack.c.l.b16 %v1760
    %v2024 = vunpack.c.l.b16 %v1761
    %v2025 = vunpack.c.l.b16 %v1762
    %v2026 = vunpack.c.l.b16 %v1763
    %v2027 = vunpack.c.l.b16 %v1764
    %v2028 = vunpack.c.l.b16 %v1765
    %v2029 = vunpack.c.l.b16 %v1766
    %v2030 = vunpack.c.l.b16 %v1767
    %v2031 = vunpack.c.l.b16 %v1768
    %v2032 = vunpack.c.l.b16 %v1769
    %v2033 = vunpack.c.l.b16 %v1770
    %v2034 = vunpack.c.l.b16 %v1771
    %v2035 = vunpack.c.l.b16 %v1772
    %v2036 = vunpack.c.l.b16 %v1773
    %v2037 = vunpack.c.l.b16 %v1774
    %v2038 = vunpack.c.l.b16 %v1775
    %v2039 = vunpack.c.l.b16 %v1776
    %v2040 = vunpack.c.l.b16 %v1777
    %v2041 = vunpack.c.l.b16 %v1778
    %v2042 = vunpack.c.l.b16 %v1779
    %v2043 = vunpack.c.l.b16 %v1780
    %v2044 = vunpack.c.l.b16 %v1781
    %v2045 = vunpack.c.l.b16 %v1782
    %v2046 = vunpack.c.l.b16 %v1783
    %v2047 = vunpack.c.l.b16 %v1784
    %v2048 = vunpack.c.l.b16 %v1785
    %v2049 = vunpack.c.l.b16 %v1786
    %v2050 = vunpack.c.l.b16 %v1787
    %v2051 = vunpack.c.l.b16 %v1788
    %v2052 = vunpack.c.l.b16 %v1789
    %v2053 = vunpack.c.l.b16 %v1790
    %v2054 = vunpack.c.l.b16 %v1791
    %v2055 = vunpack.c.l.b16 %v1792
    %v2056 = vunpack.c.l.b16 %v1793
    %v2057 = vunpack.c.l.b16 %v1794
    %v2058 = vunpack.c.l.b16 %v1795
    %v2059 = vunpack.c.l.b16 %v1796
    %v2060 = vunpack.c.l.b16 %v1797
    %v2061 = vunpack.c.l.b16 %v1798
    %v2062 = vunpack.c.l.b16 %v1799
    %v2063 = vunpack.c.l.b16 %v1800
    %v2064 = vunpack.c.l.b16 %v1801
    %v2065 = vunpack.c.l.b16 %v1802
    %v2066 = vpack.c.b16 %v1939, %v1938
    %v2067 = vpack.c.b16 %v1941, %v1940
    %v2068 = vpack.c.b16 %v1943, %v1942
    %v2069 = vpack.c.b16 %v1945, %v1944
    %v2070 = vpack.c.b16 %v1947, %v1946
    %v2071 = vpack.c.b16 %v1949, %v1948
    %v2072 = vpack.c.b16 %v1951, %v1950
    %v2073 = vpack.c.b16 %v1953, %v1952
    %v2074 = vpack.c.b16 %v1955, %v1954
    %v2075 = vpack.c.b16 %v1957, %v1956
    %v2076 = vpack.c.b16 %v1959, %v1958
    %v2077 = vpack.c.b16 %v1961, %v1960
    %v2078 = vpack.c.b16 %v1963, %v1962
    %v2079 = vpack.c.b16 %v1965, %v1964
    %v2080 = vpack.c.b16 %v1967, %v1966
    %v2081 = vpack.c.b16 %v1969, %v1968
    %v2082 = vpack.c.b16 %v1971, %v1970
    %v2083 = vpack.c.b16 %v1973, %v1972
    %v2084 = vpack.c.b16 %v1975, %v1974
    %v2085 = vpack.c.b16 %v1977, %v1976
    %v2086 = vpack.c.b16 %v1979, %v1978
    %v2087 = vpack.c.b16 %v1981, %v1980
    %v2088 = vpack.c.b16 %v1983, %v1982
    %v2089 = vpack.c.b16 %v1985, %v1984
    %v2090 = vpack.c.b16 %v1987, %v1986
    %v2091 = vpack.c.b16 %v1989, %v1988
    %v2092 = vpack.c.b16 %v1991, %v1990
    %v2093 = vpack.c.b16 %v1993, %v1992
    %v2094 = vpack.c.b16 %v1995, %v1994
    %v2095 = vpack.c.b16 %v1997, %v1996
    %v2096 = vpack.c.b16 %v1999, %v1998
    %v2097 = vpack.c.b16 %v2001, %v2000
    %v2098 = vpack.c.b16 %v2003, %v2002
    %v2099 = vpack.c.b16 %v2005, %v2004
    %v2100 = vpack.c.b16 %v2007, %v2006
    %v2101 = vpack.c.b16 %v2009, %v2008
    %v2102 = vpack.c.b16 %v2011, %v2010
    %v2103 = vpack.c.b16 %v2013, %v2012
    %v2104 = vpack.c.b16 %v2015, %v2014
    %v2105 = vpack.c.b16 %v2017, %v2016
    %v2106 = vpack.c.b16 %v2019, %v2018
    %v2107 = vpack.c.b16 %v2021, %v2020
    %v2108 = vpack.c.b16 %v2023, %v2022
    %v2109 = vpack.c.b16 %v2025, %v2024
    %v2110 = vpack.c.b16 %v2027, %v2026
    %v2111 = vpack.c.b16 %v2029, %v2028
    %v2112 = vpack.c.b16 %v2031, %v2030
    %v2113 = vpack.c.b16 %v2033, %v2032
    %v2114 = vpack.c.b16 %v2035, %v2034
    %v2115 = vpack.c.b16 %v2037, %v2036
    %v2116 = vpack.c.b16 %v2039, %v2038
    %v2117 = vpack.c.b16 %v2041, %v2040
    %v2118 = vpack.c.b16 %v2043, %v2042
    %v2119 = vpack.c.b16 %v2045, %v2044
    %v2120 = vpack.c.b16 %v2047, %v2046
    %v2121 = vpack.c.b16 %v2049, %v2048
    %v2122 = vpack.c.b16 %v2051, %v2050
    %v2123 = vpack.c.b16 %v2053, %v2052
    %v2124 = vpack.c.b16 %v2055, %v2054
    %v2125 = vpack.c.b16 %v2057, %v2056
    %v2126 = vpack.c.b16 %v2059, %v2058
    %v2127 = vpack.c.b16 %v2061, %v2060
    %v2128 = vpack.c.b16 %v2063, %v2062
    %v2129 = vpack.c.b16 %v2065, %v2064
    %2194 = vmatprep.subr.bf16.mxu0 0
    %2195 = vmatpush1.bf16.msra.mxu0 %v2066
    %2196 = vmatprep.subr.bf16.mxu0 0
    %2197 = vmatpush1.bf16.msra.mxu0 %v2067
    %2198 = vmatprep.subr.bf16.mxu0 0
    %2199 = vmatpush1.bf16.msra.mxu0 %v2068
    %2200 = vmatprep.subr.bf16.mxu0 0
    %2201 = vmatpush1.bf16.msra.mxu0 %v2069
    %2202 = vmatprep.subr.bf16.mxu0 0
    %2203 = vmatpush1.bf16.msra.mxu0 %v2070
    %2204 = vmatprep.subr.bf16.mxu0 0
    %2205 = vmatpush1.bf16.msra.mxu0 %v2071
    %2206 = vmatprep.subr.bf16.mxu0 0
    %2207 = vmatpush1.bf16.msra.mxu0 %v2072
    %2208 = vmatprep.subr.bf16.mxu0 0
    %2209 = vmatpush1.bf16.msra.mxu0 %v2073
    %2210 = vmatprep.subr.bf16.mxu0 0
    %2211 = vmatpush1.bf16.msra.mxu0 %v2074
    %2212 = vmatprep.subr.bf16.mxu0 0
    %2213 = vmatpush1.bf16.msra.mxu0 %v2075
    %2214 = vmatprep.subr.bf16.mxu0 0
    %2215 = vmatpush1.bf16.msra.mxu0 %v2076
    %2216 = vmatprep.subr.bf16.mxu0 0
    %2217 = vmatpush1.bf16.msra.mxu0 %v2077
    %2218 = vmatprep.subr.bf16.mxu0 0
    %2219 = vmatpush1.bf16.msra.mxu0 %v2078
    %2220 = vmatprep.subr.bf16.mxu0 0
    %2221 = vmatpush1.bf16.msra.mxu0 %v2079
    %2222 = vmatprep.subr.bf16.mxu0 0
    %2223 = vmatpush1.bf16.msra.mxu0 %v2080
    %2224 = vmatprep.subr.bf16.mxu0 0
    %2225 = vmatpush1.bf16.msra.mxu0 %v2081
    %2226 = vmatprep.mubr.bf16.mxu0 %v1612
    %2227 = vmatmul.mubr.bf16.gmra.mrb[0].mxu0 %v1611
    %v2228 = vpop.f32.mrb[0].mxu0
    %v2229 = vadd.f32 %v1808, %v2228
    %v2230 = vpop.f32.mrb[0].mxu0
    %v2231 = vpop.f32.mrb[0].mxu0
    %v2232 = vadd.f32 %v1808, %v2231
    %v2233 = vpop.f32.mrb[0].mxu0
    %2234 = vmatprep.mubr.bf16.mxu0 %v1620
    %2235 = vmatmul.mubr.bf16.gmra.mrb[0].mxu0 %v1619
    %v2236 = vpop.f32.mrb[0].mxu0
    %v2237 = vadd.f32 %v1808, %v2236
    %v2238 = vpop.f32.mrb[0].mxu0
    %v2239 = vpop.f32.mrb[0].mxu0
    %v2240 = vadd.f32 %v1808, %v2239
    %v2241 = vpop.f32.mrb[0].mxu0
    %2242 = vmatprep.mubr.bf16.mxu0 %v1628
    %2243 = vmatmul.mubr.bf16.gmra.mrb[0].mxu0 %v1627
    %v2244 = vpop.f32.mrb[0].mxu0
    %v2245 = vadd.f32 %v1808, %v2244
    %v2246 = vpop.f32.mrb[0].mxu0
    %v2247 = vpop.f32.mrb[0].mxu0
    %v2248 = vadd.f32 %v1808, %v2247
    %v2249 = vpop.f32.mrb[0].mxu0
    %2250 = vmatprep.mubr.bf16.mxu0 %v1636
    %2251 = vmatmul.mubr.bf16.gmra.mrb[0].mxu0 %v1635
    %v2252 = vpop.f32.mrb[0].mxu0
    %v2253 = vadd.f32 %v1808, %v2252
    %v2254 = vpop.f32.mrb[0].mxu0
    %v2255 = vpop.f32.mrb[0].mxu0
    %v2256 = vadd.f32 %v1808, %v2255
    %v2257 = vpop.f32.mrb[0].mxu0
    %2258 = vmatprep.mubr.bf16.mxu0 %v1644
    %2259 = vmatmul.mubr.bf16.gmra.mrb[0].mxu0 %v1643
    %v2260 = vpop.f32.mrb[0].mxu0
    %v2261 = vadd.f32 %v1808, %v2260
    %v2262 = vpop.f32.mrb[0].mxu0
    %v2263 = vpop.f32.mrb[0].mxu0
    %v2264 = vadd.f32 %v1808, %v2263
    %v2265 = vpop.f32.mrb[0].mxu0
    %2266 = vmatprep.mubr.bf16.mxu0 %v1652
    %2267 = vmatmul.mubr.bf16.gmra.mrb[0].mxu0 %v1651
    %v2268 = vpop.f32.mrb[0].mxu0
    %v2269 = vadd.f32 %v1808, %v2268
    %v2270 = vpop.f32.mrb[0].mxu0
    %v2271 = vpop.f32.mrb[0].mxu0
    %v2272 = vadd.f32 %v1808, %v2271
    %v2273 = vpop.f32.mrb[0].mxu0
    %2274 = vmatprep.mubr.bf16.mxu0 %v1660
    %2275 = vmatmul.mubr.bf16.gmra.mrb[0].mxu0 %v1659
    %v2276 = vpop.f32.mrb[0].mxu0
    %v2277 = vadd.f32 %v1808, %v2276
    %v2278 = vpop.f32.mrb[0].mxu0
    %v2279 = vpop.f32.mrb[0].mxu0
    %v2280 = vadd.f32 %v1808, %v2279
    %v2281 = vpop.f32.mrb[0].mxu0
    %2282 = vmatprep.mubr.bf16.mxu0 %v1668
    %2283 = vmatmul.mubr.bf16.gmra.mrb[0].mxu0 %v1667
    %v2284 = vpop.f32.mrb[0].mxu0
    %v2285 = vadd.f32 %v1808, %v2284
    %v2286 = vpop.f32.mrb[0].mxu0
    %v2287 = vpop.f32.mrb[0].mxu0
    %v2288 = vadd.f32 %v1808, %v2287
    %v2289 = vpop.f32.mrb[0].mxu0
    %2290 = vdwg.mxu0
    %2291 = vmatprep.subr.bf16.mxu0 0
    %2292 = vmatpush1.bf16.msra.mxu0 %v2082
    %2293 = vmatprep.subr.bf16.mxu0 0
    %2294 = vmatpush1.bf16.msra.mxu0 %v2083
    %2295 = vmatprep.subr.bf16.mxu0 0
    %2296 = vmatpush1.bf16.msra.mxu0 %v2084
    %2297 = vmatprep.subr.bf16.mxu0 0
    %2298 = vmatpush1.bf16.msra.mxu0 %v2085
    %2299 = vmatprep.subr.bf16.mxu0 0
    %2300 = vmatpush1.bf16.msra.mxu0 %v2086
    %2301 = vmatprep.subr.bf16.mxu0 0
    %2302 = vmatpush1.bf16.msra.mxu0 %v2087
    %2303 = vmatprep.subr.bf16.mxu0 0
    %2304 = vmatpush1.bf16.msra.mxu0 %v2088
    %2305 = vmatprep.subr.bf16.mxu0 0
    %2306 = vmatpush1.bf16.msra.mxu0 %v2089
    %2307 = vmatprep.subr.bf16.mxu0 0
    %2308 = vmatpush1.bf16.msra.mxu0 %v2090
    %2309 = vmatprep.subr.bf16.mxu0 0
    %2310 = vmatpush1.bf16.msra.mxu0 %v2091
    %2311 = vmatprep.subr.bf16.mxu0 0
    %2312 = vmatpush1.bf16.msra.mxu0 %v2092
    %2313 = vmatprep.subr.bf16.mxu0 0
    %2314 = vmatpush1.bf16.msra.mxu0 %v2093
    %2315 = vmatprep.subr.bf16.mxu0 0
    %2316 = vmatpush1.bf16.msra.mxu0 %v2094
    %2317 = vmatprep.subr.bf16.mxu0 0
    %2318 = vmatpush1.bf16.msra.mxu0 %v2095
    %2319 = vmatprep.subr.bf16.mxu0 0
    %2320 = vmatpush1.bf16.msra.mxu0 %v2096
    %2321 = vmatprep.subr.bf16.mxu0 0
    %2322 = vmatpush1.bf16.msra.mxu0 %v2097
    %2323 = vmatprep.mubr.bf16.mxu0 %v1614
    %2324 = vmatmul.mubr.bf16.gmra.mrb[0].mxu0 %v1613
    %v2325 = vpop.f32.mrb[0].mxu0
    %v2326 = vadd.f32 %v2229, %v2325
    %v2327 = vpop.f32.mrb[0].mxu0
    %v2328 = vpop.f32.mrb[0].mxu0
    %v2329 = vadd.f32 %v2232, %v2328
    %v2330 = vpop.f32.mrb[0].mxu0
    %2331 = vmatprep.mubr.bf16.mxu0 %v1622
    %2332 = vmatmul.mubr.bf16.gmra.mrb[0].mxu0 %v1621
    %v2333 = vpop.f32.mrb[0].mxu0
    %v2334 = vadd.f32 %v2237, %v2333
    %v2335 = vpop.f32.mrb[0].mxu0
    %v2336 = vpop.f32.mrb[0].mxu0
    %v2337 = vadd.f32 %v2240, %v2336
    %v2338 = vpop.f32.mrb[0].mxu0
    %2339 = vmatprep.mubr.bf16.mxu0 %v1630
    %2340 = vmatmul.mubr.bf16.gmra.mrb[0].mxu0 %v1629
    %v2341 = vpop.f32.mrb[0].mxu0
    %v2342 = vadd.f32 %v2245, %v2341
    %v2343 = vpop.f32.mrb[0].mxu0
    %v2344 = vpop.f32.mrb[0].mxu0
    %v2345 = vadd.f32 %v2248, %v2344
    %v2346 = vpop.f32.mrb[0].mxu0
    %2347 = vmatprep.mubr.bf16.mxu0 %v1638
    %2348 = vmatmul.mubr.bf16.gmra.mrb[0].mxu0 %v1637
    %v2349 = vpop.f32.mrb[0].mxu0
    %v2350 = vadd.f32 %v2253, %v2349
    %v2351 = vpop.f32.mrb[0].mxu0
    %v2352 = vpop.f32.mrb[0].mxu0
    %v2353 = vadd.f32 %v2256, %v2352
    %v2354 = vpop.f32.mrb[0].mxu0
    %2355 = vmatprep.mubr.bf16.mxu0 %v1646
    %2356 = vmatmul.mubr.bf16.gmra.mrb[0].mxu0 %v1645
    %v2357 = vpop.f32.mrb[0].mxu0
    %v2358 = vadd.f32 %v2261, %v2357
    %v2359 = vpop.f32.mrb[0].mxu0
    %v2360 = vpop.f32.mrb[0].mxu0
    %v2361 = vadd.f32 %v2264, %v2360
    %v2362 = vpop.f32.mrb[0].mxu0
    %2363 = vmatprep.mubr.bf16.mxu0 %v1654
    %2364 = vmatmul.mubr.bf16.gmra.mrb[0].mxu0 %v1653
    %v2365 = vpop.f32.mrb[0].mxu0
    %v2366 = vadd.f32 %v2269, %v2365
    %v2367 = vpop.f32.mrb[0].mxu0
    %v2368 = vpop.f32.mrb[0].mxu0
    %v2369 = vadd.f32 %v2272, %v2368
    %v2370 = vpop.f32.mrb[0].mxu0
    %2371 = vmatprep.mubr.bf16.mxu0 %v1662
    %2372 = vmatmul.mubr.bf16.gmra.mrb[0].mxu0 %v1661
    %v2373 = vpop.f32.mrb[0].mxu0
    %v2374 = vadd.f32 %v2277, %v2373
    %v2375 = vpop.f32.mrb[0].mxu0
    %v2376 = vpop.f32.mrb[0].mxu0
    %v2377 = vadd.f32 %v2280, %v2376
    %v2378 = vpop.f32.mrb[0].mxu0
    %2379 = vmatprep.mubr.bf16.mxu0 %v1670
    %2380 = vmatmul.mubr.bf16.gmra.mrb[0].mxu0 %v1669
    %v2381 = vpop.f32.mrb[0].mxu0
    %v2382 = vadd.f32 %v2285, %v2381
    %v2383 = vpop.f32.mrb[0].mxu0
    %v2384 = vpop.f32.mrb[0].mxu0
    %v2385 = vadd.f32 %v2288, %v2384
    %v2386 = vpop.f32.mrb[0].mxu0
    %2387 = vdwg.mxu0
    %2388 = vmatprep.subr.bf16.mxu0 0
    %2389 = vmatpush1.bf16.msra.mxu0 %v2098
    %2390 = vmatprep.subr.bf16.mxu0 0
    %2391 = vmatpush1.bf16.msra.mxu0 %v2099
    %2392 = vmatprep.subr.bf16.mxu0 0
    %2393 = vmatpush1.bf16.msra.mxu0 %v2100
    %2394 = vmatprep.subr.bf16.mxu0 0
    %2395 = vmatpush1.bf16.msra.mxu0 %v2101
    %2396 = vmatprep.subr.bf16.mxu0 0
    %2397 = vmatpush1.bf16.msra.mxu0 %v2102
    %2398 = vmatprep.subr.bf16.mxu0 0
    %2399 = vmatpush1.bf16.msra.mxu0 %v2103
    %2400 = vmatprep.subr.bf16.mxu0 0
    %2401 = vmatpush1.bf16.msra.mxu0 %v2104
    %2402 = vmatprep.subr.bf16.mxu0 0
    %2403 = vmatpush1.bf16.msra.mxu0 %v2105
    %2404 = vmatprep.subr.bf16.mxu0 0
    %2405 = vmatpush1.bf16.msra.mxu0 %v2106
    %2406 = vmatprep.subr.bf16.mxu0 0
    %2407 = vmatpush1.bf16.msra.mxu0 %v2107
    %2408 = vmatprep.subr.bf16.mxu0 0
    %2409 = vmatpush1.bf16.msra.mxu0 %v2108
    %2410 = vmatprep.subr.bf16.mxu0 0
    %2411 = vmatpush1.bf16.msra.mxu0 %v2109
    %2412 = vmatprep.subr.bf16.mxu0 0
    %2413 = vmatpush1.bf16.msra.mxu0 %v2110
    %2414 = vmatprep.subr.bf16.mxu0 0
    %2415 = vmatpush1.bf16.msra.mxu0 %v2111
    %2416 = vmatprep.subr.bf16.mxu0 0
    %2417 = vmatpush1.bf16.msra.mxu0 %v2112
    %2418 = vmatprep.subr.bf16.mxu0 0
    %2419 = vmatpush1.bf16.msra.mxu0 %v2113
    %2420 = vmatprep.mubr.bf16.mxu0 %v1616
    %2421 = vmatmul.mubr.bf16.gmra.mrb[0].mxu0 %v1615
    %v2422 = vpop.f32.mrb[0].mxu0
    %v2423 = vadd.f32 %v2326, %v2422
    %v2424 = vpop.f32.mrb[0].mxu0
    %v2425 = vpop.f32.mrb[0].mxu0
    %v2426 = vadd.f32 %v2329, %v2425
    %v2427 = vpop.f32.mrb[0].mxu0
    %2428 = vmatprep.mubr.bf16.mxu0 %v1624
    %2429 = vmatmul.mubr.bf16.gmra.mrb[0].mxu0 %v1623
    %v2430 = vpop.f32.mrb[0].mxu0
    %v2431 = vadd.f32 %v2334, %v2430
    %v2432 = vpop.f32.mrb[0].mxu0
    %v2433 = vpop.f32.mrb[0].mxu0
    %v2434 = vadd.f32 %v2337, %v2433
    %v2435 = vpop.f32.mrb[0].mxu0
    %2436 = vmatprep.mubr.bf16.mxu0 %v1632
    %2437 = vmatmul.mubr.bf16.gmra.mrb[0].mxu0 %v1631
    %v2438 = vpop.f32.mrb[0].mxu0
    %v2439 = vadd.f32 %v2342, %v2438
    %v2440 = vpop.f32.mrb[0].mxu0
    %v2441 = vpop.f32.mrb[0].mxu0
    %v2442 = vadd.f32 %v2345, %v2441
    %v2443 = vpop.f32.mrb[0].mxu0
    %2444 = vmatprep.mubr.bf16.mxu0 %v1640
    %2445 = vmatmul.mubr.bf16.gmra.mrb[0].mxu0 %v1639
    %v2446 = vpop.f32.mrb[0].mxu0
    %v2447 = vadd.f32 %v2350, %v2446
    %v2448 = vpop.f32.mrb[0].mxu0
    %v2449 = vpop.f32.mrb[0].mxu0
    %v2450 = vadd.f32 %v2353, %v2449
    %v2451 = vpop.f32.mrb[0].mxu0
    %2452 = vmatprep.mubr.bf16.mxu0 %v1648
    %2453 = vmatmul.mubr.bf16.gmra.mrb[0].mxu0 %v1647
    %v2454 = vpop.f32.mrb[0].mxu0
    %v2455 = vadd.f32 %v2358, %v2454
    %v2456 = vpop.f32.mrb[0].mxu0
    %v2457 = vpop.f32.mrb[0].mxu0
    %v2458 = vadd.f32 %v2361, %v2457
    %v2459 = vpop.f32.mrb[0].mxu0
    %2460 = vmatprep.mubr.bf16.mxu0 %v1656
    %2461 = vmatmul.mubr.bf16.gmra.mrb[0].mxu0 %v1655
    %v2462 = vpop.f32.mrb[0].mxu0
    %v2463 = vadd.f32 %v2366, %v2462
    %v2464 = vpop.f32.mrb[0].mxu0
    %v2465 = vpop.f32.mrb[0].mxu0
    %v2466 = vadd.f32 %v2369, %v2465
    %v2467 = vpop.f32.mrb[0].mxu0
    %2468 = vmatprep.mubr.bf16.mxu0 %v1664
    %2469 = vmatmul.mubr.bf16.gmra.mrb[0].mxu0 %v1663
    %v2470 = vpop.f32.mrb[0].mxu0
    %v2471 = vadd.f32 %v2374, %v2470
    %v2472 = vpop.f32.mrb[0].mxu0
    %v2473 = vpop.f32.mrb[0].mxu0
    %v2474 = vadd.f32 %v2377, %v2473
    %v2475 = vpop.f32.mrb[0].mxu0
    %2476 = vmatprep.mubr.bf16.mxu0 %v1672
    %2477 = vmatmul.mubr.bf16.gmra.mrb[0].mxu0 %v1671
    %v2478 = vpop.f32.mrb[0].mxu0
    %v2479 = vadd.f32 %v2382, %v2478
    %v2480 = vpop.f32.mrb[0].mxu0
    %v2481 = vpop.f32.mrb[0].mxu0
    %v2482 = vadd.f32 %v2385, %v2481
    %v2483 = vpop.f32.mrb[0].mxu0
    %2484 = vdwg.mxu0
    %2485 = vmatprep.subr.bf16.mxu0 0
    %2486 = vmatpush1.bf16.msra.mxu0 %v2114
    %2487 = vmatprep.subr.bf16.mxu0 0
    %2488 = vmatpush1.bf16.msra.mxu0 %v2115
    %2489 = vmatprep.subr.bf16.mxu0 0
    %2490 = vmatpush1.bf16.msra.mxu0 %v2116
    %2491 = vmatprep.subr.bf16.mxu0 0
    %2492 = vmatpush1.bf16.msra.mxu0 %v2117
    %2493 = vmatprep.subr.bf16.mxu0 0
    %2494 = vmatpush1.bf16.msra.mxu0 %v2118
    %2495 = vmatprep.subr.bf16.mxu0 0
    %2496 = vmatpush1.bf16.msra.mxu0 %v2119
    %2497 = vmatprep.subr.bf16.mxu0 0
    %2498 = vmatpush1.bf16.msra.mxu0 %v2120
    %2499 = vmatprep.subr.bf16.mxu0 0
    %2500 = vmatpush1.bf16.msra.mxu0 %v2121
    %2501 = vmatprep.subr.bf16.mxu0 0
    %2502 = vmatpush1.bf16.msra.mxu0 %v2122
    %2503 = vmatprep.subr.bf16.mxu0 0
    %2504 = vmatpush1.bf16.msra.mxu0 %v2123
    %2505 = vmatprep.subr.bf16.mxu0 0
    %2506 = vmatpush1.bf16.msra.mxu0 %v2124
    %2507 = vmatprep.subr.bf16.mxu0 0
    %2508 = vmatpush1.bf16.msra.mxu0 %v2125
    %2509 = vmatprep.subr.bf16.mxu0 0
    %2510 = vmatpush1.bf16.msra.mxu0 %v2126
    %2511 = vmatprep.subr.bf16.mxu0 0
    %2512 = vmatpush1.bf16.msra.mxu0 %v2127
    %2513 = vmatprep.subr.bf16.mxu0 0
    %2514 = vmatpush1.bf16.msra.mxu0 %v2128
    %2515 = vmatprep.subr.bf16.mxu0 0
    %2516 = vmatpush1.bf16.msra.mxu0 %v2129
    %2517 = vmatprep.mubr.bf16.mxu0 %v1618
    %2518 = vmatmul.mubr.bf16.gmra.mrb[0].mxu0 %v1617
    %v2519 = vpop.f32.mrb[0].mxu0
    %v2520 = vadd.f32 %v2423, %v2519
    %v2521 = vpop.f32.mrb[0].mxu0
    %v2522 = vpop.f32.mrb[0].mxu0
    %v2523 = vadd.f32 %v2426, %v2522
    %v2524 = vpop.f32.mrb[0].mxu0
    %2525 = vmatprep.mubr.bf16.mxu0 %v1626
    %2526 = vmatmul.mubr.bf16.gmra.mrb[0].mxu0 %v1625
    %v2527 = vpop.f32.mrb[0].mxu0
    %v2528 = vadd.f32 %v2431, %v2527
    %v2529 = vpop.f32.mrb[0].mxu0
    %v2530 = vpop.f32.mrb[0].mxu0
    %v2531 = vadd.f32 %v2434, %v2530
    %v2532 = vpop.f32.mrb[0].mxu0
    %2533 = vmatprep.mubr.bf16.mxu0 %v1634
    %2534 = vmatmul.mubr.bf16.gmra.mrb[0].mxu0 %v1633
    %v2535 = vpop.f32.mrb[0].mxu0
    %v2536 = vadd.f32 %v2439, %v2535
    %v2537 = vpop.f32.mrb[0].mxu0
    %v2538 = vpop.f32.mrb[0].mxu0
    %v2539 = vadd.f32 %v2442, %v2538
    %v2540 = vpop.f32.mrb[0].mxu0
    %2541 = vmatprep.mubr.bf16.mxu0 %v1642
    %2542 = vmatmul.mubr.bf16.gmra.mrb[0].mxu0 %v1641
    %v2543 = vpop.f32.mrb[0].mxu0
    %v2544 = vadd.f32 %v2447, %v2543
    %v2545 = vpop.f32.mrb[0].mxu0
    %v2546 = vpop.f32.mrb[0].mxu0
    %v2547 = vadd.f32 %v2450, %v2546
    %v2548 = vpop.f32.mrb[0].mxu0
    %2549 = vmatprep.mubr.bf16.mxu0 %v1650
    %2550 = vmatmul.mubr.bf16.gmra.mrb[0].mxu0 %v1649
    %v2551 = vpop.f32.mrb[0].mxu0
    %v2552 = vadd.f32 %v2455, %v2551
    %v2553 = vpop.f32.mrb[0].mxu0
    %v2554 = vpop.f32.mrb[0].mxu0
    %v2555 = vadd.f32 %v2458, %v2554
    %v2556 = vpop.f32.mrb[0].mxu0
    %2557 = vmatprep.mubr.bf16.mxu0 %v1658
    %2558 = vmatmul.mubr.bf16.gmra.mrb[0].mxu0 %v1657
    %v2559 = vpop.f32.mrb[0].mxu0
    %v2560 = vadd.f32 %v2463, %v2559
    %v2561 = vpop.f32.mrb[0].mxu0
    %v2562 = vpop.f32.mrb[0].mxu0
    %v2563 = vadd.f32 %v2466, %v2562
    %v2564 = vpop.f32.mrb[0].mxu0
    %2565 = vmatprep.mubr.bf16.mxu0 %v1666
    %2566 = vmatmul.mubr.bf16.gmra.mrb[0].mxu0 %v1665
    %v2567 = vpop.f32.mrb[0].mxu0
    %v2568 = vadd.f32 %v2471, %v2567
    %v2569 = vpop.f32.mrb[0].mxu0
    %v2570 = vpop.f32.mrb[0].mxu0
    %v2571 = vadd.f32 %v2474, %v2570
    %v2572 = vpop.f32.mrb[0].mxu0
    %2573 = vmatprep.mubr.bf16.mxu0 %v1674
    %2574 = vmatmul.mubr.bf16.gmra.mrb[0].mxu0 %v1673
    %v2575 = vpop.f32.mrb[0].mxu0
    %v2576 = vadd.f32 %v2479, %v2575
    %v2577 = vpop.f32.mrb[0].mxu0
    %v2578 = vpop.f32.mrb[0].mxu0
    %v2579 = vadd.f32 %v2482, %v2578
    %v2580 = vpop.f32.mrb[0].mxu0
    %2581 = vdwg.mxu0
    %v2582 = vmax.f32 %v2520, 0.0
    %v2583 = vmax.f32 %v2523, 0.0
    %v2584 = vmax.f32 %v2528, 0.0
    %v2585 = vmax.f32 %v2531, 0.0
    %v2586 = vmax.f32 %v2536, 0.0
    %v2587 = vmax.f32 %v2539, 0.0
    %v2588 = vmax.f32 %v2544, 0.0
    %v2589 = vmax.f32 %v2547, 0.0
    %v2590 = vmax.f32 %v2552, 0.0
    %v2591 = vmax.f32 %v2555, 0.0
    %v2592 = vmax.f32 %v2560, 0.0
    %v2593 = vmax.f32 %v2563, 0.0
    %v2594 = vmax.f32 %v2568, 0.0
    %v2595 = vmax.f32 %v2571, 0.0
    %v2596 = vmax.f32 %v2576, 0.0
    %v2597 = vmax.f32 %v2579, 0.0
    %v2598 = vpack.c.bf16 %v2583, %v2582
    %v2599 = vpack.c.bf16 %v2585, %v2584
    %v2600 = vpack.c.bf16 %v2587, %v2586
    %v2601 = vpack.c.bf16 %v2589, %v2588
    %v2602 = vpack.c.bf16 %v2591, %v2590
    %v2603 = vpack.c.bf16 %v2593, %v2592
    %v2604 = vpack.c.bf16 %v2595, %v2594
    %v2605 = vpack.c.bf16 %v2597, %v2596
    %v2606 = vld [vmem:[%s3] sm:$0xf]
    %v2607 = vld [vmem:[%s3 + $0x4] sm:$0xf]
    %v2608 = vld [vmem:[%s3 + $0x8] sm:$0xf]
    %v2609 = vld [vmem:[%s3 + $0xc] sm:$0xf]
    %v2610 = vld [vmem:[%s3 + $0x10] sm:$0xf]
    %v2611 = vld [vmem:[%s3 + $0x14] sm:$0xf]
    %v2612 = vld [vmem:[%s3 + $0x18] sm:$0xf]
    %v2613 = vld [vmem:[%s3 + $0x1c] sm:$0xf]
    %v2614 = vld [vmem:[%s3 + $0x20] sm:$0xf]
    %v2615 = vld [vmem:[%s3 + $0x24] sm:$0xf]
    %v2616 = vld [vmem:[%s3 + $0x28] sm:$0xf]
    %v2617 = vld [vmem:[%s3 + $0x2c] sm:$0xf]
    %v2618 = vld [vmem:[%s3 + $0x30] sm:$0xf]
    %v2619 = vld [vmem:[%s3 + $0x34] sm:$0xf]
    %v2620 = vld [vmem:[%s3 + $0x38] sm:$0xf]
    %v2621 = vld [vmem:[%s3 + $0x3c] sm:$0xf]
    %v2622 = vld [vmem:[%s4] sm:$0x1]
    %v2624 = vlaneseq
    %v2625 = vshrl.u32 %v2624, 7
    %v2626 = vsub.s32 0, %v2625
    %v2627 = vrot.slane %v2622, %v2626
    %v2645 = vunpack.c.l.b16 %v2606
    %v2646 = vunpack.c.l.b16 %v2607
    %v2647 = vunpack.c.l.b16 %v2608
    %v2648 = vunpack.c.l.b16 %v2609
    %v2649 = vunpack.c.l.b16 %v2610
    %v2650 = vunpack.c.l.b16 %v2611
    %v2651 = vunpack.c.l.b16 %v2612
    %v2652 = vunpack.c.l.b16 %v2613
    %v2653 = vunpack.c.l.b16 %v2614
    %v2654 = vunpack.c.l.b16 %v2615
    %v2655 = vunpack.c.l.b16 %v2616
    %v2656 = vunpack.c.l.b16 %v2617
    %v2657 = vunpack.c.l.b16 %v2618
    %v2658 = vunpack.c.l.b16 %v2619
    %v2659 = vunpack.c.l.b16 %v2620
    %v2660 = vunpack.c.l.b16 %v2621
    %v2661 = vpack.c.b16 %v2646, %v2645
    %v2662 = vpack.c.b16 %v2648, %v2647
    %v2663 = vpack.c.b16 %v2650, %v2649
    %v2664 = vpack.c.b16 %v2652, %v2651
    %v2665 = vpack.c.b16 %v2654, %v2653
    %v2666 = vpack.c.b16 %v2656, %v2655
    %v2667 = vpack.c.b16 %v2658, %v2657
    %v2668 = vpack.c.b16 %v2660, %v2659
    %2677 = vmatprep.subr.bf16.mxu0 0
    %2678 = vmatpush1.bf16.msra.mxu0 %v2661
    %2679 = vmatprep.subr.bf16.mxu0 0
    %2680 = vmatpush1.bf16.msra.mxu0 %v2662
    %2681 = vmatprep.subr.bf16.mxu0 0
    %2682 = vmatpush1.bf16.msra.mxu0 %v2663
    %2683 = vmatprep.subr.bf16.mxu0 0
    %2684 = vmatpush1.bf16.msra.mxu0 %v2664
    %2685 = vmatprep.subr.bf16.mxu0 0
    %2686 = vmatpush1.bf16.msra.mxu0 %v2665
    %2687 = vmatprep.subr.bf16.mxu0 0
    %2688 = vmatpush1.bf16.msra.mxu0 %v2666
    %2689 = vmatprep.subr.bf16.mxu0 0
    %2690 = vmatpush1.bf16.msra.mxu0 %v2667
    %2691 = vmatprep.subr.bf16.mxu0 0
    %2692 = vmatpush1.bf16.msra.mxu0 %v2668
    %2693 = vmatprep.subr.bf16.mxu0 0
    %2694 = vmatpush1.bf16.msra.mxu0 0
    %2695 = vmatprep.subr.bf16.mxu0 0
    %2696 = vmatpush1.bf16.msra.mxu0 0
    %2697 = vmatprep.subr.bf16.mxu0 0
    %2698 = vmatpush1.bf16.msra.mxu0 0
    %2699 = vmatprep.subr.bf16.mxu0 0
    %2700 = vmatpush1.bf16.msra.mxu0 0
    %2701 = vmatprep.subr.bf16.mxu0 0
    %2702 = vmatpush1.bf16.msra.mxu0 0
    %2703 = vmatprep.subr.bf16.mxu0 0
    %2704 = vmatpush1.bf16.msra.mxu0 0
    %2705 = vmatprep.subr.bf16.mxu0 0
    %2706 = vmatpush1.bf16.msra.mxu0 0
    %2707 = vmatprep.subr.bf16.mxu0 0
    %2708 = vmatpush1.bf16.msra.mxu0 0
    %2709 = vmatprep.mubr.bf16.mxu0 0
    %2710 = vmatmul.mubr.bf16.gmra.mrb[0].mxu0 %v2598
    %v2711 = vpop.f32.mrb[0].mxu0
    %v2712 = vadd.f32 %v2627, %v2711
    %v2713 = vpop.f32.mrb[0].mxu0
    %v2714 = vpop.f32.mrb[0].mxu0
    %v2715 = vadd.f32 %v2627, %v2714
    %v2716 = vpop.f32.mrb[0].mxu0
    %2717 = vmatprep.mubr.bf16.mxu0 0
    %2718 = vmatmul.mubr.bf16.gmra.mrb[0].mxu0 %v2599
    %v2719 = vpop.f32.mrb[0].mxu0
    %v2720 = vadd.f32 %v2627, %v2719
    %v2721 = vpop.f32.mrb[0].mxu0
    %v2722 = vpop.f32.mrb[0].mxu0
    %v2723 = vadd.f32 %v2627, %v2722
    %v2724 = vpop.f32.mrb[0].mxu0
    %2725 = vmatprep.mubr.bf16.mxu0 0
    %2726 = vmatmul.mubr.bf16.gmra.mrb[0].mxu0 %v2600
    %v2727 = vpop.f32.mrb[0].mxu0
    %v2728 = vadd.f32 %v2627, %v2727
    %v2729 = vpop.f32.mrb[0].mxu0
    %v2730 = vpop.f32.mrb[0].mxu0
    %v2731 = vadd.f32 %v2627, %v2730
    %v2732 = vpop.f32.mrb[0].mxu0
    %2733 = vmatprep.mubr.bf16.mxu0 0
    %2734 = vmatmul.mubr.bf16.gmra.mrb[0].mxu0 %v2601
    %v2735 = vpop.f32.mrb[0].mxu0
    %v2736 = vadd.f32 %v2627, %v2735
    %v2737 = vpop.f32.mrb[0].mxu0
    %v2738 = vpop.f32.mrb[0].mxu0
    %v2739 = vadd.f32 %v2627, %v2738
    %v2740 = vpop.f32.mrb[0].mxu0
    %2741 = vmatprep.mubr.bf16.mxu0 0
    %2742 = vmatmul.mubr.bf16.gmra.mrb[0].mxu0 %v2602
    %v2743 = vpop.f32.mrb[0].mxu0
    %v2744 = vadd.f32 %v2627, %v2743
    %v2745 = vpop.f32.mrb[0].mxu0
    %v2746 = vpop.f32.mrb[0].mxu0
    %v2747 = vadd.f32 %v2627, %v2746
    %v2748 = vpop.f32.mrb[0].mxu0
    %2749 = vmatprep.mubr.bf16.mxu0 0
    %2750 = vmatmul.mubr.bf16.gmra.mrb[0].mxu0 %v2603
    %v2751 = vpop.f32.mrb[0].mxu0
    %v2752 = vadd.f32 %v2627, %v2751
    %v2753 = vpop.f32.mrb[0].mxu0
    %v2754 = vpop.f32.mrb[0].mxu0
    %v2755 = vadd.f32 %v2627, %v2754
    %v2756 = vpop.f32.mrb[0].mxu0
    %2757 = vmatprep.mubr.bf16.mxu0 0
    %2758 = vmatmul.mubr.bf16.gmra.mrb[0].mxu0 %v2604
    %v2759 = vpop.f32.mrb[0].mxu0
    %v2760 = vadd.f32 %v2627, %v2759
    %v2761 = vpop.f32.mrb[0].mxu0
    %v2762 = vpop.f32.mrb[0].mxu0
    %v2763 = vadd.f32 %v2627, %v2762
    %v2764 = vpop.f32.mrb[0].mxu0
    %2765 = vmatprep.mubr.bf16.mxu0 0
    %2766 = vmatmul.mubr.bf16.gmra.mrb[0].mxu0 %v2605
    %v2767 = vpop.f32.mrb[0].mxu0
    %v2768 = vadd.f32 %v2627, %v2767
    %v2769 = vpop.f32.mrb[0].mxu0
    %v2770 = vpop.f32.mrb[0].mxu0
    %v2771 = vadd.f32 %v2627, %v2770
    %v2772 = vpop.f32.mrb[0].mxu0
    %2773 = vdwg.mxu0
    %v2774 = vmax.f32 %v2712, 0.0
    %v2775 = vmax.f32 %v2715, 0.0
    %v2776 = vmax.f32 %v2720, 0.0
    %v2777 = vmax.f32 %v2723, 0.0
    %v2778 = vmax.f32 %v2728, 0.0
    %v2779 = vmax.f32 %v2731, 0.0
    %v2780 = vmax.f32 %v2736, 0.0
    %v2781 = vmax.f32 %v2739, 0.0
    %v2782 = vmax.f32 %v2744, 0.0
    %v2783 = vmax.f32 %v2747, 0.0
    %v2784 = vmax.f32 %v2752, 0.0
    %v2785 = vmax.f32 %v2755, 0.0
    %v2786 = vmax.f32 %v2760, 0.0
    %v2787 = vmax.f32 %v2763, 0.0
    %v2788 = vmax.f32 %v2768, 0.0
    %v2789 = vmax.f32 %v2771, 0.0
    %v2790 = vpack.c.bf16 %v2775, %v2774
    %v2791 = vpack.c.bf16 %v2777, %v2776
    %v2792 = vpack.c.bf16 %v2779, %v2778
    %v2793 = vpack.c.bf16 %v2781, %v2780
    %v2794 = vpack.c.bf16 %v2783, %v2782
    %v2795 = vpack.c.bf16 %v2785, %v2784
    %v2796 = vpack.c.bf16 %v2787, %v2786
    %v2797 = vpack.c.bf16 %v2789, %v2788
    %v2798 = vld [vmem:[#allocation7] sm:$0xf]
    %v2799 = vld [vmem:[#allocation7 + $0x4] sm:$0xf]
    %v2800 = vld [vmem:[#allocation7 + $0x8] sm:$0xf]
    %v2801 = vld [vmem:[#allocation7 + $0xc] sm:$0xf]
    %v2802 = vld [vmem:[#allocation7 + $0x10] sm:$0xf]
    %v2803 = vld [vmem:[#allocation7 + $0x14] sm:$0xf]
    %v2804 = vld [vmem:[#allocation7 + $0x18] sm:$0xf]
    %v2805 = vld [vmem:[#allocation7 + $0x1c] sm:$0xf]
    %v2806 = vld [vmem:[#allocation7 + $0x20] sm:$0xf]
    %v2807 = vld [vmem:[#allocation7 + $0x24] sm:$0xf]
    %v2808 = vld [vmem:[#allocation7 + $0x28] sm:$0xf]
    %v2809 = vld [vmem:[#allocation7 + $0x2c] sm:$0xf]
    %v2810 = vld [vmem:[#allocation7 + $0x30] sm:$0xf]
    %v2811 = vld [vmem:[#allocation7 + $0x34] sm:$0xf]
    %v2812 = vld [vmem:[#allocation7 + $0x38] sm:$0xf]
    %v2813 = vld [vmem:[#allocation7 + $0x3c] sm:$0xf]
    %v2814 = vld [vmem:[%s6] sm:$0x1]
    %v2816 = vlaneseq
    %v2817 = vshrl.u32 %v2816, 7
    %v2818 = vsub.s32 0, %v2817
    %v2819 = vrot.slane %v2814, %v2818
    %v2837 = vunpack.c.l.b16 %v2798
    %v2838 = vunpack.c.l.b16 %v2799
    %v2839 = vunpack.c.l.b16 %v2800
    %v2840 = vunpack.c.l.b16 %v2801
    %v2841 = vunpack.c.l.b16 %v2802
    %v2842 = vunpack.c.l.b16 %v2803
    %v2843 = vunpack.c.l.b16 %v2804
    %v2844 = vunpack.c.l.b16 %v2805
    %v2845 = vunpack.c.l.b16 %v2806
    %v2846 = vunpack.c.l.b16 %v2807
    %v2847 = vunpack.c.l.b16 %v2808
    %v2848 = vunpack.c.l.b16 %v2809
    %v2849 = vunpack.c.l.b16 %v2810
    %v2850 = vunpack.c.l.b16 %v2811
    %v2851 = vunpack.c.l.b16 %v2812
    %v2852 = vunpack.c.l.b16 %v2813
    %v2853 = vpack.c.b16 %v2838, %v2837
    %v2854 = vpack.c.b16 %v2840, %v2839
    %v2855 = vpack.c.b16 %v2842, %v2841
    %v2856 = vpack.c.b16 %v2844, %v2843
    %v2857 = vpack.c.b16 %v2846, %v2845
    %v2858 = vpack.c.b16 %v2848, %v2847
    %v2859 = vpack.c.b16 %v2850, %v2849
    %v2860 = vpack.c.b16 %v2852, %v2851
    %2869 = vmatprep.subr.bf16.mxu0 0
    %2870 = vmatpush1.bf16.msra.mxu0 %v2853
    %2871 = vmatprep.subr.bf16.mxu0 0
    %2872 = vmatpush1.bf16.msra.mxu0 %v2854
    %2873 = vmatprep.subr.bf16.mxu0 0
    %2874 = vmatpush1.bf16.msra.mxu0 %v2855
    %2875 = vmatprep.subr.bf16.mxu0 0
    %2876 = vmatpush1.bf16.msra.mxu0 %v2856
    %2877 = vmatprep.subr.bf16.mxu0 0
    %2878 = vmatpush1.bf16.msra.mxu0 %v2857
    %2879 = vmatprep.subr.bf16.mxu0 0
    %2880 = vmatpush1.bf16.msra.mxu0 %v2858
    %2881 = vmatprep.subr.bf16.mxu0 0
    %2882 = vmatpush1.bf16.msra.mxu0 %v2859
    %2883 = vmatprep.subr.bf16.mxu0 0
    %2884 = vmatpush1.bf16.msra.mxu0 %v2860
    %2885 = vmatprep.subr.bf16.mxu0 0
    %2886 = vmatpush1.bf16.msra.mxu0 0
    %2887 = vmatprep.subr.bf16.mxu0 0
    %2888 = vmatpush1.bf16.msra.mxu0 0
    %2889 = vmatprep.subr.bf16.mxu0 0
    %2890 = vmatpush1.bf16.msra.mxu0 0
    %2891 = vmatprep.subr.bf16.mxu0 0
    %2892 = vmatpush1.bf16.msra.mxu0 0
    %2893 = vmatprep.subr.bf16.mxu0 0
    %2894 = vmatpush1.bf16.msra.mxu0 0
    %2895 = vmatprep.subr.bf16.mxu0 0
    %2896 = vmatpush1.bf16.msra.mxu0 0
    %2897 = vmatprep.subr.bf16.mxu0 0
    %2898 = vmatpush1.bf16.msra.mxu0 0
    %2899 = vmatprep.subr.bf16.mxu0 0
    %2900 = vmatpush1.bf16.msra.mxu0 0
    %2901 = vmatprep.mubr.bf16.mxu0 0
    %2902 = vmatmul.mubr.bf16.gmra.mrb[0].mxu0 %v2790
    %v2903 = vpop.f32.mrb[0].mxu0
    %v2904 = vadd.f32 %v2819, %v2903
    %v2905 = vpop.f32.mrb[0].mxu0
    %v2906 = vpop.f32.mrb[0].mxu0
    %v2907 = vadd.f32 %v2819, %v2906
    %v2908 = vpop.f32.mrb[0].mxu0
    %2909 = vmatprep.mubr.bf16.mxu0 0
    %2910 = vmatmul.mubr.bf16.gmra.mrb[0].mxu0 %v2791
    %v2911 = vpop.f32.mrb[0].mxu0
    %v2912 = vadd.f32 %v2819, %v2911
    %v2913 = vpop.f32.mrb[0].mxu0
    %v2914 = vpop.f32.mrb[0].mxu0
    %v2915 = vadd.f32 %v2819, %v2914
    %v2916 = vpop.f32.mrb[0].mxu0
    %2917 = vmatprep.mubr.bf16.mxu0 0
    %2918 = vmatmul.mubr.bf16.gmra.mrb[0].mxu0 %v2792
    %v2919 = vpop.f32.mrb[0].mxu0
    %v2920 = vadd.f32 %v2819, %v2919
    %v2921 = vpop.f32.mrb[0].mxu0
    %v2922 = vpop.f32.mrb[0].mxu0
    %v2923 = vadd.f32 %v2819, %v2922
    %v2924 = vpop.f32.mrb[0].mxu0
    %2925 = vmatprep.mubr.bf16.mxu0 0
    %2926 = vmatmul.mubr.bf16.gmra.mrb[0].mxu0 %v2793
    %v2927 = vpop.f32.mrb[0].mxu0
    %v2928 = vadd.f32 %v2819, %v2927
    %v2929 = vpop.f32.mrb[0].mxu0
    %v2930 = vpop.f32.mrb[0].mxu0
    %v2931 = vadd.f32 %v2819, %v2930
    %v2932 = vpop.f32.mrb[0].mxu0
    %2933 = vmatprep.mubr.bf16.mxu0 0
    %2934 = vmatmul.mubr.bf16.gmra.mrb[0].mxu0 %v2794
    %v2935 = vpop.f32.mrb[0].mxu0
    %v2936 = vadd.f32 %v2819, %v2935
    %v2937 = vpop.f32.mrb[0].mxu0
    %v2938 = vpop.f32.mrb[0].mxu0
    %v2939 = vadd.f32 %v2819, %v2938
    %v2940 = vpop.f32.mrb[0].mxu0
    %2941 = vmatprep.mubr.bf16.mxu0 0
    %2942 = vmatmul.mubr.bf16.gmra.mrb[0].mxu0 %v2795
    %v2943 = vpop.f32.mrb[0].mxu0
    %v2944 = vadd.f32 %v2819, %v2943
    %v2945 = vpop.f32.mrb[0].mxu0
    %v2946 = vpop.f32.mrb[0].mxu0
    %v2947 = vadd.f32 %v2819, %v2946
    %v2948 = vpop.f32.mrb[0].mxu0
    %2949 = vmatprep.mubr.bf16.mxu0 0
    %2950 = vmatmul.mubr.bf16.gmra.mrb[0].mxu0 %v2796
    %v2951 = vpop.f32.mrb[0].mxu0
    %v2952 = vadd.f32 %v2819, %v2951
    %v2953 = vpop.f32.mrb[0].mxu0
    %v2954 = vpop.f32.mrb[0].mxu0
    %v2955 = vadd.f32 %v2819, %v2954
    %v2956 = vpop.f32.mrb[0].mxu0
    %2957 = vmatprep.mubr.bf16.mxu0 0
    %2958 = vmatmul.mubr.bf16.gmra.mrb[0].mxu0 %v2797
    %v2959 = vpop.f32.mrb[0].mxu0
    %v2960 = vadd.f32 %v2819, %v2959
    %v2961 = vpop.f32.mrb[0].mxu0
    %v2962 = vpop.f32.mrb[0].mxu0
    %v2963 = vadd.f32 %v2819, %v2962
    %v2964 = vpop.f32.mrb[0].mxu0
    %2965 = vdwg.mxu0
    %v2966 = vmax.f32 %v2904, 0.0
    %v2967 = vmax.f32 %v2907, 0.0
    %v2968 = vmax.f32 %v2912, 0.0
    %v2969 = vmax.f32 %v2915, 0.0
    %v2970 = vmax.f32 %v2920, 0.0
    %v2971 = vmax.f32 %v2923, 0.0
    %v2972 = vmax.f32 %v2928, 0.0
    %v2973 = vmax.f32 %v2931, 0.0
    %v2974 = vmax.f32 %v2936, 0.0
    %v2975 = vmax.f32 %v2939, 0.0
    %v2976 = vmax.f32 %v2944, 0.0
    %v2977 = vmax.f32 %v2947, 0.0
    %v2978 = vmax.f32 %v2952, 0.0
    %v2979 = vmax.f32 %v2955, 0.0
    %v2980 = vmax.f32 %v2960, 0.0
    %v2981 = vmax.f32 %v2963, 0.0
    %v2982 = vpack.c.bf16 %v2967, %v2966
    %v2983 = vpack.c.bf16 %v2969, %v2968
    %v2984 = vpack.c.bf16 %v2971, %v2970
    %v2985 = vpack.c.bf16 %v2973, %v2972
    %v2986 = vpack.c.bf16 %v2975, %v2974
    %v2987 = vpack.c.bf16 %v2977, %v2976
    %v2988 = vpack.c.bf16 %v2979, %v2978
    %v2989 = vpack.c.bf16 %v2981, %v2980
    %v2990 = vld [vmem:[%s7] sm:$0xf]
    %v2991 = vld [vmem:[%s7 + $0x4] sm:$0xf]
    %v2992 = vld [vmem:[%s7 + $0x8] sm:$0xf]
    %v2993 = vld [vmem:[%s7 + $0xc] sm:$0xf]
    %v2994 = vld [vmem:[%s7 + $0x10] sm:$0xf]
    %v2995 = vld [vmem:[%s7 + $0x14] sm:$0xf]
    %v2996 = vld [vmem:[%s7 + $0x18] sm:$0xf]
    %v2997 = vld [vmem:[%s7 + $0x1c] sm:$0xf]
    %v2998 = vld [vmem:[%s7 + $0x20] sm:$0xf]
    %v2999 = vld [vmem:[%s7 + $0x24] sm:$0xf]
    %v3000 = vld [vmem:[%s7 + $0x28] sm:$0xf]
    %v3001 = vld [vmem:[%s7 + $0x2c] sm:$0xf]
    %v3002 = vld [vmem:[%s7 + $0x30] sm:$0xf]
    %v3003 = vld [vmem:[%s7 + $0x34] sm:$0xf]
    %v3004 = vld [vmem:[%s7 + $0x38] sm:$0xf]
    %v3005 = vld [vmem:[%s7 + $0x3c] sm:$0xf]
    %v3006 = vld [vmem:[%s8] sm:$0x1]
    %v3008 = vlaneseq
    %v3009 = vshrl.u32 %v3008, 7
    %v3010 = vsub.s32 0, %v3009
    %v3011 = vrot.slane %v3006, %v3010
    %v3029 = vunpack.c.l.b16 %v2990
    %v3030 = vunpack.c.l.b16 %v2991
    %v3031 = vunpack.c.l.b16 %v2992
    %v3032 = vunpack.c.l.b16 %v2993
    %v3033 = vunpack.c.l.b16 %v2994
    %v3034 = vunpack.c.l.b16 %v2995
    %v3035 = vunpack.c.l.b16 %v2996
    %v3036 = vunpack.c.l.b16 %v2997
    %v3037 = vunpack.c.l.b16 %v2998
    %v3038 = vunpack.c.l.b16 %v2999
    %v3039 = vunpack.c.l.b16 %v3000
    %v3040 = vunpack.c.l.b16 %v3001
    %v3041 = vunpack.c.l.b16 %v3002
    %v3042 = vunpack.c.l.b16 %v3003
    %v3043 = vunpack.c.l.b16 %v3004
    %v3044 = vunpack.c.l.b16 %v3005
    %v3045 = vpack.c.b16 %v3030, %v3029
    %v3046 = vpack.c.b16 %v3032, %v3031
    %v3047 = vpack.c.b16 %v3034, %v3033
    %v3048 = vpack.c.b16 %v3036, %v3035
    %v3049 = vpack.c.b16 %v3038, %v3037
    %v3050 = vpack.c.b16 %v3040, %v3039
    %v3051 = vpack.c.b16 %v3042, %v3041
    %v3052 = vpack.c.b16 %v3044, %v3043
    %3061 = vmatprep.subr.bf16.mxu0 0
    %3062 = vmatpush1.bf16.msra.mxu0 %v3045
    %3063 = vmatprep.subr.bf16.mxu0 0
    %3064 = vmatpush1.bf16.msra.mxu0 %v3046
    %3065 = vmatprep.subr.bf16.mxu0 0
    %3066 = vmatpush1.bf16.msra.mxu0 %v3047
    %3067 = vmatprep.subr.bf16.mxu0 0
    %3068 = vmatpush1.bf16.msra.mxu0 %v3048
    %3069 = vmatprep.subr.bf16.mxu0 0
    %3070 = vmatpush1.bf16.msra.mxu0 %v3049
    %3071 = vmatprep.subr.bf16.mxu0 0
    %3072 = vmatpush1.bf16.msra.mxu0 %v3050
    %3073 = vmatprep.subr.bf16.mxu0 0
    %3074 = vmatpush1.bf16.msra.mxu0 %v3051
    %3075 = vmatprep.subr.bf16.mxu0 0
    %3076 = vmatpush1.bf16.msra.mxu0 %v3052
    %3077 = vmatprep.subr.bf16.mxu0 0
    %3078 = vmatpush1.bf16.msra.mxu0 0
    %3079 = vmatprep.subr.bf16.mxu0 0
    %3080 = vmatpush1.bf16.msra.mxu0 0
    %3081 = vmatprep.subr.bf16.mxu0 0
    %3082 = vmatpush1.bf16.msra.mxu0 0
    %3083 = vmatprep.subr.bf16.mxu0 0
    %3084 = vmatpush1.bf16.msra.mxu0 0
    %3085 = vmatprep.subr.bf16.mxu0 0
    %3086 = vmatpush1.bf16.msra.mxu0 0
    %3087 = vmatprep.subr.bf16.mxu0 0
    %3088 = vmatpush1.bf16.msra.mxu0 0
    %3089 = vmatprep.subr.bf16.mxu0 0
    %3090 = vmatpush1.bf16.msra.mxu0 0
    %3091 = vmatprep.subr.bf16.mxu0 0
    %3092 = vmatpush1.bf16.msra.mxu0 0
    %3093 = vmatprep.mubr.bf16.mxu0 0
    %3094 = vmatmul.mubr.bf16.gmra.mrb[0].mxu0 %v2982
    %v3095 = vpop.f32.mrb[0].mxu0
    %v3096 = vadd.f32 %v3011, %v3095
    %v3097 = vpop.f32.mrb[0].mxu0
    %v3098 = vpop.f32.mrb[0].mxu0
    %v3099 = vadd.f32 %v3011, %v3098
    %v3100 = vpop.f32.mrb[0].mxu0
    %3101 = vmatprep.mubr.bf16.mxu0 0
    %3102 = vmatmul.mubr.bf16.gmra.mrb[0].mxu0 %v2983
    %v3103 = vpop.f32.mrb[0].mxu0
    %v3104 = vadd.f32 %v3011, %v3103
    %v3105 = vpop.f32.mrb[0].mxu0
    %v3106 = vpop.f32.mrb[0].mxu0
    %v3107 = vadd.f32 %v3011, %v3106
    %v3108 = vpop.f32.mrb[0].mxu0
    %3109 = vmatprep.mubr.bf16.mxu0 0
    %3110 = vmatmul.mubr.bf16.gmra.mrb[0].mxu0 %v2984
    %v3111 = vpop.f32.mrb[0].mxu0
    %v3112 = vadd.f32 %v3011, %v3111
    %v3113 = vpop.f32.mrb[0].mxu0
    %v3114 = vpop.f32.mrb[0].mxu0
    %v3115 = vadd.f32 %v3011, %v3114
    %v3116 = vpop.f32.mrb[0].mxu0
    %3117 = vmatprep.mubr.bf16.mxu0 0
    %3118 = vmatmul.mubr.bf16.gmra.mrb[0].mxu0 %v2985
    %v3119 = vpop.f32.mrb[0].mxu0
    %v3120 = vadd.f32 %v3011, %v3119
    %v3121 = vpop.f32.mrb[0].mxu0
    %v3122 = vpop.f32.mrb[0].mxu0
    %v3123 = vadd.f32 %v3011, %v3122
    %v3124 = vpop.f32.mrb[0].mxu0
    %3125 = vmatprep.mubr.bf16.mxu0 0
    %3126 = vmatmul.mubr.bf16.gmra.mrb[0].mxu0 %v2986
    %v3127 = vpop.f32.mrb[0].mxu0
    %v3128 = vadd.f32 %v3011, %v3127
    %v3129 = vpop.f32.mrb[0].mxu0
    %v3130 = vpop.f32.mrb[0].mxu0
    %v3131 = vadd.f32 %v3011, %v3130
    %v3132 = vpop.f32.mrb[0].mxu0
    %3133 = vmatprep.mubr.bf16.mxu0 0
    %3134 = vmatmul.mubr.bf16.gmra.mrb[0].mxu0 %v2987
    %v3135 = vpop.f32.mrb[0].mxu0
    %v3136 = vadd.f32 %v3011, %v3135
    %v3137 = vpop.f32.mrb[0].mxu0
    %v3138 = vpop.f32.mrb[0].mxu0
    %v3139 = vadd.f32 %v3011, %v3138
    %v3140 = vpop.f32.mrb[0].mxu0
    %3141 = vmatprep.mubr.bf16.mxu0 0
    %3142 = vmatmul.mubr.bf16.gmra.mrb[0].mxu0 %v2988
    %v3143 = vpop.f32.mrb[0].mxu0
    %v3144 = vadd.f32 %v3011, %v3143
    %v3145 = vpop.f32.mrb[0].mxu0
    %v3146 = vpop.f32.mrb[0].mxu0
    %v3147 = vadd.f32 %v3011, %v3146
    %v3148 = vpop.f32.mrb[0].mxu0
    %3149 = vmatprep.mubr.bf16.mxu0 0
    %3150 = vmatmul.mubr.bf16.gmra.mrb[0].mxu0 %v2989
    %v3151 = vpop.f32.mrb[0].mxu0
    %v3152 = vadd.f32 %v3011, %v3151
    %v3153 = vpop.f32.mrb[0].mxu0
    %v3154 = vpop.f32.mrb[0].mxu0
    %v3155 = vadd.f32 %v3011, %v3154
    %v3156 = vpop.f32.mrb[0].mxu0
    %3157 = vdwg.mxu0
    %vm3158 = vcmask 48128
    %v3159 = vsel %vm3158, %v3096, 0.0
    %3160 = vadd.xlane.f32.xlu0 %v3159
    %v3161 = vpop.xlane.xlu0 %3160
    %v3162 = vsel %vm3158, %v3099, 0.0
    %3163 = vadd.xlane.f32.xlu0 %v3162
    %v3164 = vpop.xlane.xlu0 %3163
    %v3165 = vsel %vm3158, %v3104, 0.0
    %3166 = vadd.xlane.f32.xlu0 %v3165
    %v3167 = vpop.xlane.xlu0 %3166
    %v3168 = vsel %vm3158, %v3107, 0.0
    %3169 = vadd.xlane.f32.xlu0 %v3168
    %v3170 = vpop.xlane.xlu0 %3169
    %v3171 = vsel %vm3158, %v3112, 0.0
    %3172 = vadd.xlane.f32.xlu0 %v3171
    %v3173 = vpop.xlane.xlu0 %3172
    %v3174 = vsel %vm3158, %v3115, 0.0
    %3175 = vadd.xlane.f32.xlu0 %v3174
    %v3176 = vpop.xlane.xlu0 %3175
    %v3177 = vsel %vm3158, %v3120, 0.0
    %3178 = vadd.xlane.f32.xlu0 %v3177
    %v3179 = vpop.xlane.xlu0 %3178
    %v3180 = vsel %vm3158, %v3123, 0.0
    %3181 = vadd.xlane.f32.xlu0 %v3180
    %v3182 = vpop.xlane.xlu0 %3181
    %v3183 = vsel %vm3158, %v3128, 0.0
    %3184 = vadd.xlane.f32.xlu0 %v3183
    %v3185 = vpop.xlane.xlu0 %3184
    %v3186 = vsel %vm3158, %v3131, 0.0
    %3187 = vadd.xlane.f32.xlu0 %v3186
    %v3188 = vpop.xlane.xlu0 %3187
    %v3189 = vsel %vm3158, %v3136, 0.0
    %3190 = vadd.xlane.f32.xlu0 %v3189
    %v3191 = vpop.xlane.xlu0 %3190
    %v3192 = vsel %vm3158, %v3139, 0.0
    %3193 = vadd.xlane.f32.xlu0 %v3192
    %v3194 = vpop.xlane.xlu0 %3193
    %v3195 = vsel %vm3158, %v3144, 0.0
    %3196 = vadd.xlane.f32.xlu0 %v3195
    %v3197 = vpop.xlane.xlu0 %3196
    %v3198 = vsel %vm3158, %v3147, 0.0
    %3199 = vadd.xlane.f32.xlu0 %v3198
    %v3200 = vpop.xlane.xlu0 %3199
    %v3201 = vsel %vm3158, %v3152, 0.0
    %3202 = vadd.xlane.f32.xlu0 %v3201
    %v3203 = vpop.xlane.xlu0 %3202
    %v3204 = vsel %vm3158, %v3155, 0.0
    %3205 = vadd.xlane.f32.xlu0 %v3204
    %v3206 = vpop.xlane.xlu0 %3205
    %v3207 = vrcp.pop 6.0
    %v3208 = vmul.f32 %v3161, %v3207
    %v3209 = vmul.f32 %v3164, %v3207
    %v3210 = vmul.f32 %v3167, %v3207
    %v3211 = vmul.f32 %v3170, %v3207
    %v3212 = vmul.f32 %v3173, %v3207
    %v3213 = vmul.f32 %v3176, %v3207
    %v3214 = vmul.f32 %v3179, %v3207
    %v3215 = vmul.f32 %v3182, %v3207
    %v3216 = vmul.f32 %v3185, %v3207
    %v3217 = vmul.f32 %v3188, %v3207
    %v3218 = vmul.f32 %v3191, %v3207
    %v3219 = vmul.f32 %v3194, %v3207
    %v3220 = vmul.f32 %v3197, %v3207
    %v3221 = vmul.f32 %v3200, %v3207
    %v3222 = vmul.f32 %v3203, %v3207
    %v3223 = vmul.f32 %v3206, %v3207
    %v3224 = vsub.f32 %v3096, %v3208
    %v3225 = vsub.f32 %v3099, %v3209
    %v3226 = vsub.f32 %v3104, %v3210
    %v3227 = vsub.f32 %v3107, %v3211
    %v3228 = vsub.f32 %v3112, %v3212
    %v3229 = vsub.f32 %v3115, %v3213
    %v3230 = vsub.f32 %v3120, %v3214
    %v3231 = vsub.f32 %v3123, %v3215
    %v3232 = vsub.f32 %v3128, %v3216
    %v3233 = vsub.f32 %v3131, %v3217
    %v3234 = vsub.f32 %v3136, %v3218
    %v3235 = vsub.f32 %v3139, %v3219
    %v3236 = vsub.f32 %v3144, %v3220
    %v3237 = vsub.f32 %v3147, %v3221
    %v3238 = vsub.f32 %v3152, %v3222
    %v3239 = vsub.f32 %v3155, %v3223
    %3241 = vset.pattern.permute.xlu0 6
    %3242 = vperm.xlu0 %3241, %v3096
    %v3243 = vpop.permute.xlu0 %3242
    %3246 = vset.pattern.permute.xlu0 6
    %3247 = vperm.xlu0 %3246, %v3099
    %v3248 = vpop.permute.xlu0 %3247
    %3251 = vset.pattern.permute.xlu0 6
    %3252 = vperm.xlu0 %3251, %v3104
    %v3253 = vpop.permute.xlu0 %3252
    %3256 = vset.pattern.permute.xlu0 6
    %3257 = vperm.xlu0 %3256, %v3107
    %v3258 = vpop.permute.xlu0 %3257
    %3261 = vset.pattern.permute.xlu0 6
    %3262 = vperm.xlu0 %3261, %v3112
    %v3263 = vpop.permute.xlu0 %3262
    %3266 = vset.pattern.permute.xlu0 6
    %3267 = vperm.xlu0 %3266, %v3115
    %v3268 = vpop.permute.xlu0 %3267
    %3271 = vset.pattern.permute.xlu0 6
    %3272 = vperm.xlu0 %3271, %v3120
    %v3273 = vpop.permute.xlu0 %3272
    %3276 = vset.pattern.permute.xlu0 6
    %3277 = vperm.xlu0 %3276, %v3123
    %v3278 = vpop.permute.xlu0 %3277
    %3281 = vset.pattern.permute.xlu0 6
    %3282 = vperm.xlu0 %3281, %v3128
    %v3283 = vpop.permute.xlu0 %3282
    %3286 = vset.pattern.permute.xlu0 6
    %3287 = vperm.xlu0 %3286, %v3131
    %v3288 = vpop.permute.xlu0 %3287
    %3291 = vset.pattern.permute.xlu0 6
    %3292 = vperm.xlu0 %3291, %v3136
    %v3293 = vpop.permute.xlu0 %3292
    %3296 = vset.pattern.permute.xlu0 6
    %3297 = vperm.xlu0 %3296, %v3139
    %v3298 = vpop.permute.xlu0 %3297
    %3301 = vset.pattern.permute.xlu0 6
    %3302 = vperm.xlu0 %3301, %v3144
    %v3303 = vpop.permute.xlu0 %3302
    %3306 = vset.pattern.permute.xlu0 6
    %3307 = vperm.xlu0 %3306, %v3147
    %v3308 = vpop.permute.xlu0 %3307
    %3311 = vset.pattern.permute.xlu0 6
    %3312 = vperm.xlu0 %3311, %v3152
    %v3313 = vpop.permute.xlu0 %3312
    %3316 = vset.pattern.permute.xlu0 6
    %3317 = vperm.xlu0 %3316, %v3155
    %v3318 = vpop.permute.xlu0 %3317
    %v3320 = vadd.f32 %v3243, %v3224
    %v3321 = vadd.f32 %v3248, %v3225
    %v3322 = vadd.f32 %v3253, %v3226
    %v3323 = vadd.f32 %v3258, %v3227
    %v3324 = vadd.f32 %v3263, %v3228
    %v3325 = vadd.f32 %v3268, %v3229
    %v3326 = vadd.f32 %v3273, %v3230
    %v3327 = vadd.f32 %v3278, %v3231
    %v3328 = vadd.f32 %v3283, %v3232
    %v3329 = vadd.f32 %v3288, %v3233
    %v3330 = vadd.f32 %v3293, %v3234
    %v3331 = vadd.f32 %v3298, %v3235
    %v3332 = vadd.f32 %v3303, %v3236
    %v3333 = vadd.f32 %v3308, %v3237
    %v3334 = vadd.f32 %v3313, %v3238
    %v3335 = vadd.f32 %v3318, %v3239
    %3336 = vst.msk [vmem:[#allocation8] sm:$0xff] %vm3158, %v3320
    %3337 = vst.msk [vmem:[#allocation8 + $0x8] sm:$0xff] %vm3158, %v3321
    %3338 = vst.msk [vmem:[#allocation8 + $0x10] sm:$0xff] %vm3158, %v3322
    %3339 = vst.msk [vmem:[#allocation8 + $0x18] sm:$0xff] %vm3158, %v3323
    %3340 = vst.msk [vmem:[#allocation8 + $0x20] sm:$0xff] %vm3158, %v3324
    %3341 = vst.msk [vmem:[#allocation8 + $0x28] sm:$0xff] %vm3158, %v3325
    %3342 = vst.msk [vmem:[#allocation8 + $0x30] sm:$0xff] %vm3158, %v3326
    %3343 = vst.msk [vmem:[#allocation8 + $0x38] sm:$0xff] %vm3158, %v3327
    %3344 = vst.msk [vmem:[#allocation8 + $0x40] sm:$0xff] %vm3158, %v3328
    %3345 = vst.msk [vmem:[#allocation8 + $0x48] sm:$0xff] %vm3158, %v3329
    %3346 = vst.msk [vmem:[#allocation8 + $0x50] sm:$0xff] %vm3158, %v3330
    %3347 = vst.msk [vmem:[#allocation8 + $0x58] sm:$0xff] %vm3158, %v3331
    %3348 = vst.msk [vmem:[#allocation8 + $0x60] sm:$0xff] %vm3158, %v3332
    %3349 = vst.msk [vmem:[#allocation8 + $0x68] sm:$0xff] %vm3158, %v3333
    %3350 = vst.msk [vmem:[#allocation8 + $0x70] sm:$0xff] %vm3158, %v3334
    %3351 = vst.msk [vmem:[#allocation8 + $0x78] sm:$0xff] %vm3158, %v3335
    // Predicated region
    $region50: #{tpu_custom_call.1} parent=1 // pred_check
      _
    $region51: #{tpu_custom_call.1} parent=1 // pred_check_branch
      %3353 = sbr.rel (0) target = $region53
    $region52: #{tpu_custom_call.1} parent=1 // pred_region
      %s3355 = ssub.s32 2048, 32
      %3356 = vsyncadd [#allocation4], %s3355
      %s3357 = sshll.u32 [#allocation8], 4
      %s3358 = int_to_ptr.vmem [resolvable:$true] %s3357
      %3363 = dma.vmem_to_hbm [thread:$0]  %s3358, 32, %s9, [#allocation4], 32, 32, 2
    $region53: #{tpu_custom_call.1} parent=1 // pred_fallthru
      _
    // Predicated region
    $region54: #{tpu_custom_call.1} parent=1 // pred_check
      _
    $region55: #{tpu_custom_call.1} parent=1 // pred_check_branch
      %3365 = sbr.rel (0) target = $region57
    $region56: #{tpu_custom_call.1} parent=1 // pred_region
      %3366 = dma.done [#allocation4], 2048
    $region57: #{tpu_custom_call.1} parent=1 // pred_fallthru
      _
    %3367 = vsyncpa [#allocation3], 1
    %3368 = vsyncpa [#allocation6], 1
    %3369 = vsyncpa [#allocation4], 1

</llo_original>
